<compile_context>
chip_gen: v6e
topology: v6e:2x2x1
jax: 0.10.0
libtpu: 0.0.40
codegen_flags: <defaults>
</compile_context>

<pallas_src>
import jax
import jax.numpy as jnp
from jax.experimental import pallas as pl
from jax.experimental.pallas import tpu as pltpu


# ------------------------------ tuning knobs --------------------------------

_TN_MAX = 1024                      # lane tile over flattened spatial pixels
_VMEM_LIMIT = 32 * 1024 * 1024      # explicit scoped-VMEM budget (see header)


def _pick_tn(n, tn_max=_TN_MAX):
    """Lane tile: full extent when it fits (full-dim blocks need no 128
    divisibility), otherwise a large multiple of 128; ragged last block is
    masked by Pallas, so no pad/slice HBM round trips are needed."""
    if n <= tn_max:
        return n
    return tn_max


def _mxu_cast(w, x):
    """Feed the MXU bf16 (native rate on v6e/v7x, halves operand bytes) only
    when the channel dims are at least one packed sublane tile; tiny channel
    counts (this toy config) stay f32.  Accumulation / epilogue are always f32
    (keeps v5e's VPU, which has no bf16, on its fast path)."""
    if w.shape[0] >= 16 and w.shape[1] >= 16:
        return w.astype(jnp.bfloat16), x.astype(jnp.bfloat16)
    return w, x


# ----------------------------- Pallas kernels ------------------------------

def _pw_conv_bn_relu_kernel(x_ref, w_ref, b_ref, o_ref):
    # x:(Cin,TN)  w:(Cout,Cin) [BN scale pre-folded]  b:(Cout,1)  o:(Cout,TN)
    w, x = _mxu_cast(w_ref[...], x_ref[...])
    y = jnp.dot(w, x, preferred_element_type=jnp.float32)
    o_ref[...] = jnp.maximum(y + b_ref[...], 0.0)


def _fu_conv_bn_relu_kernel(xr_ref, xi_ref, wr_ref, wi_ref, b_ref,
                            or_ref, oi_ref):
    # FourierUnit 1x1 conv + BN + ReLU on interleaved (re,im) channels, with
    # the interleave resolved entirely in VMEM:
    #   xr/xi:(C,TN)  wr/wi:(2C,C)  b:(2C,1)  or/oi:(C,TN)
    wr, xr = _mxu_cast(wr_ref[...], xr_ref[...])
    wi, xi = _mxu_cast(wi_ref[...], xi_ref[...])
    y = (jnp.dot(wr, xr, preferred_element_type=jnp.float32)
         + jnp.dot(wi, xi, preferred_element_type=jnp.float32))
    y = jnp.maximum(y + b_ref[...], 0.0)
    c = or_ref.shape[0]
    or_ref[...] = y[:c]          # output rows were pre-permuted: [re... , im...]
    oi_ref[...] = y[c:]


def _add_pw_conv_kernel(a_ref, b_ref, w_ref, o_ref):
    # w @ (a + b) : residual add fused with the final 1x1 conv (no BN/ReLU)
    s = a_ref[...] + b_ref[...]
    w, s = _mxu_cast(w_ref[...], s)
    o_ref[...] = jnp.dot(w, s, preferred_element_type=jnp.float32)


# ------------------------------ Pallas wrappers -----------------------------

def pointwise_conv_bn_relu(x, w, scale, bias, tn_max=_TN_MAX):
    """relu(bn(conv1x1(x))).  x:(B,Cin,N), w:(Cout,Cin), scale/bias:(Cout,)."""
    B, cin, n = x.shape
    cout = w.shape[0]
    tn = _pick_tn(n, tn_max)
    grid = (B, pl.cdiv(n, tn))
    w_s = (w * scale[:, None]).astype(jnp.float32)          # fold BN scale
    b = bias.reshape(cout, 1).astype(jnp.float32)
    cost = pl.CostEstimate(
        flops=2 * B * n * cin * cout, transcendentals=0,
        bytes_accessed=4 * (B * n * cin + B * n * cout + cin * cout + cout))
    return pl.pallas_call(
        _pw_conv_bn_relu_kernel,
        out_shape=jax.ShapeDtypeStruct((B, cout, n), jnp.float32),
        grid=grid,
        in_specs=[
            pl.BlockSpec((None, cin, tn), lambda b_, j: (b_, 0, j)),
            pl.BlockSpec((cout, cin), lambda b_, j: (0, 0)),
            pl.BlockSpec((cout, 1), lambda b_, j: (0, 0)),
        ],
        out_specs=pl.BlockSpec((None, cout, tn), lambda b_, j: (b_, 0, j)),
        compiler_params=pltpu.CompilerParams(
            dimension_semantics=("parallel", "parallel"),
            vmem_limit_bytes=_VMEM_LIMIT),
        cost_estimate=cost,
    )(x, w_s, b)


def fourier_conv_bn_relu(xr, xi, w, scale, bias, tn_max=_TN_MAX):
    """Fused FourierUnit conv+BN+ReLU.  xr/xi:(B,C,N) fft real/imag planes,
    w:(2C,2C) over interleaved channels [c0_re, c0_im, ...].  Returns
    (out_re, out_im), each (B,C,N)."""
    B, c, n = xr.shape
    c2 = 2 * c
    tn = _pick_tn(n, tn_max)
    grid = (B, pl.cdiv(n, tn))
    w_s = w * scale[:, None]                                  # fold BN scale
    # Permute output channels to [all re, all im] and split input channels by
    # (re, im) parity — done once on a tiny (2C,2C) weight in plain JAX, so the
    # interleaved (B, 2C, H, Wr) tensor never materializes in HBM.
    perm = jnp.concatenate([jnp.arange(0, c2, 2), jnp.arange(1, c2, 2)])
    w_p = w_s[perm]
    b_p = bias[perm].reshape(c2, 1).astype(jnp.float32)
    w_re = w_p[:, 0::2].astype(jnp.float32)                   # acts on real plane
    w_im = w_p[:, 1::2].astype(jnp.float32)                   # acts on imag plane
    cost = pl.CostEstimate(
        flops=2 * B * n * c2 * c2, transcendentals=0,
        bytes_accessed=4 * (4 * B * n * c + 2 * c2 * c + c2))
    out_re, out_im = pl.pallas_call(
        _fu_conv_bn_relu_kernel,
        out_shape=(jax.ShapeDtypeStruct((B, c, n), jnp.float32),
                   jax.ShapeDtypeStruct((B, c, n), jnp.float32)),
        grid=grid,
        in_specs=[
            pl.BlockSpec((None, c, tn), lambda b_, j: (b_, 0, j)),
            pl.BlockSpec((None, c, tn), lambda b_, j: (b_, 0, j)),
            pl.BlockSpec((c2, c), lambda b_, j: (0, 0)),
            pl.BlockSpec((c2, c), lambda b_, j: (0, 0)),
            pl.BlockSpec((c2, 1), lambda b_, j: (0, 0)),
        ],
        out_specs=(pl.BlockSpec((None, c, tn), lambda b_, j: (b_, 0, j)),
                   pl.BlockSpec((None, c, tn), lambda b_, j: (b_, 0, j))),
        compiler_params=pltpu.CompilerParams(
            dimension_semantics=("parallel", "parallel"),
            vmem_limit_bytes=_VMEM_LIMIT),
        cost_estimate=cost,
    )(xr, xi, w_re, w_im, b_p)
    return out_re, out_im


def add_pointwise_conv(a, b, w, tn_max=_TN_MAX):
    """conv1x1(a + b).  a,b:(B,Cin,N), w:(Cout,Cin)."""
    B, cin, n = a.shape
    cout = w.shape[0]
    tn = _pick_tn(n, tn_max)
    grid = (B, pl.cdiv(n, tn))
    cost = pl.CostEstimate(
        flops=2 * B * n * cin * cout + B * n * cin, transcendentals=0,
        bytes_accessed=4 * (2 * B * n * cin + B * n * cout + cin * cout))
    return pl.pallas_call(
        _add_pw_conv_kernel,
        out_shape=jax.ShapeDtypeStruct((B, cout, n), jnp.float32),
        grid=grid,
        in_specs=[
            pl.BlockSpec((None, cin, tn), lambda b_, j: (b_, 0, j)),
            pl.BlockSpec((None, cin, tn), lambda b_, j: (b_, 0, j)),
            pl.BlockSpec((cout, cin), lambda b_, j: (0, 0)),
        ],
        out_specs=pl.BlockSpec((None, cout, tn), lambda b_, j: (b_, 0, j)),
        compiler_params=pltpu.CompilerParams(
            dimension_semantics=("parallel", "parallel"),
            vmem_limit_bytes=_VMEM_LIMIT),
        cost_estimate=cost,
    )(a, b, w.astype(jnp.float32))


# --------------------------- params / BN folding ----------------------------

def bn_eval_affine(gamma, beta, running_mean, running_var, eps=1e-5):
    scale = gamma / jnp.sqrt(running_var + eps)
    bias = beta - running_mean * scale
    return scale, bias


def init_params(key, in_channels, out_channels):
    c2 = out_channels // 2
    k1, k2, k3, k4, k5, k6, k7 = jax.random.split(key, 7)
    params = {
        # conv1: 1x1, in_channels -> c2, no bias  (stored (Cout, Cin) like torch)
        "w1": 0.1 * jax.random.normal(k1, (c2, in_channels), jnp.float32),
        "bn1_gamma": 1.0 + 0.05 * jax.random.normal(k2, (c2,), jnp.float32),
        "bn1_beta": 0.05 * jax.random.normal(k3, (c2,), jnp.float32),
        # FourierUnit conv: 1x1, 2*c2 -> 2*c2, no bias (interleaved re/im chans)
        "wfu": 0.1 * jax.random.normal(k4, (2 * c2, 2 * c2), jnp.float32),
        "bnfu_gamma": 1.0 + 0.05 * jax.random.normal(k5, (2 * c2,), jnp.float32),
        "bnfu_beta": 0.05 * jax.random.normal(k6, (2 * c2,), jnp.float32),
        # conv2: 1x1, c2 -> out_channels, no bias
        "w2": 0.1 * jax.random.normal(k7, (out_channels, c2), jnp.float32),
    }
    # BN running stats as at PyTorch init (eval mode)
    params["bn1_mean"] = jnp.zeros((c2,), jnp.float32)
    params["bn1_var"] = jnp.ones((c2,), jnp.float32)
    params["bnfu_mean"] = jnp.zeros((2 * c2,), jnp.float32)
    params["bnfu_var"] = jnp.ones((2 * c2,), jnp.float32)
    return params


# ----------------------------- SpectralTransform ----------------------------

def fourier_unit(x, w, bn_scale, bn_bias):
    """FourierUnit forward (ffc3d=False, fft_norm='ortho', no SE/pos-enc)."""
    B, C, H, W = x.shape
    # TODO(synk): FFT has no Pallas primitive; rfftn/irfftn stay in plain JAX.
    ff = jnp.fft.rfftn(x, axes=(-2, -1), norm="ortho")       # (B,C,H,Wr) complex64
    Wr = ff.shape[-1]
    n = H * Wr
    xr = jnp.real(ff).reshape(B, C, n)
    xi = jnp.imag(ff).reshape(B, C, n)
    yr, yi = fourier_conv_bn_relu(xr, xi, w, bn_scale, bn_bias)
    hc = jax.lax.complex(yr, yi).reshape(B, C, H, Wr)
    out = jnp.fft.irfftn(hc, s=(H, W), axes=(-2, -1), norm="ortho")
    return out.astype(jnp.float32)


def spectral_transform(x, params, out_channels):
    """SpectralTransform forward: stride=1, groups=1, enable_lfu=False."""
    B, Cin, H, W = x.shape
    c2 = out_channels // 2
    n = H * W
    # downsample = Identity (stride=1)

    # conv1 -> BN -> ReLU (Pallas); NCHW -> (B,C,HW) is a free reshape.
    s1, b1 = bn_eval_affine(params["bn1_gamma"], params["bn1_beta"],
                            params["bn1_mean"], params["bn1_var"])
    x1 = pointwise_conv_bn_relu(x.reshape(B, Cin, n), params["w1"], s1, b1)

    # FourierUnit (Pallas conv between the FFTs)
    sf, bf = bn_eval_affine(params["bnfu_gamma"], params["bnfu_beta"],
                            params["bnfu_mean"], params["bnfu_var"])
    fu_out = fourier_unit(x1.reshape(B, c2, H, W), params["wfu"], sf, bf)

    # enable_lfu=False -> xs contributes nothing; conv2(x1 + fu_out) (Pallas)
    om = add_pointwise_conv(x1, fu_out.reshape(B, c2, n), params["w2"])
    return om.reshape(B, out_channels, H, W)


# ----------------------------------- main -----------------------------------

if __name__ == "__main__":
    B, IN_CH, OUT_CH, H, W = 2, 4, 8, 16, 16
    key = jax.random.PRNGKey(0)
    kx, kp = jax.random.split(key)
    x = jax.random.normal(kx, (B, IN_CH, H, W), jnp.float32)
    params = init_params(kp, IN_CH, OUT_CH)

    fwd = jax.jit(spectral_transform, static_argnums=2)
    out = jax.block_until_ready(fwd(x, params, OUT_CH))

    assert out.shape == (B, OUT_CH, H, W), out.shape
    assert bool(jnp.all(jnp.isfinite(out)))
    print("KERNEL_OK")
</pallas_src>

<mosaic_0001>
module attributes {stable_mosaic.version = 11 : i64} {
  func.func @_pw_conv_bn_relu_kernel(%arg0: i32, %arg1: i32, %arg2: memref<1x4x256xf32, #tpu.memory_space<vmem>>, %arg3: memref<4x4xf32, #tpu.memory_space<vmem>>, %arg4: memref<4x1xf32, #tpu.memory_space<vmem>>, %arg5: memref<1x4x256xf32, #tpu.memory_space<vmem>>) attributes {dimension_semantics = [#tpu.dimension_semantics<parallel>, #tpu.dimension_semantics<parallel>], iteration_bounds = array<i64: 2, 1>, scalar_prefetch = 0 : i64, scratch_operands = 0 : i64, tpu.core_type = #tpu.core_type<tc>, window_params = [{transform_indices = @transform_0, window_bounds = array<i64: 1, 4, 256>}, {pipeline_mode = #tpu.pipeline_mode<synchronous>, transform_indices = @transform_1, window_bounds = array<i64: 4, 4>}, {pipeline_mode = #tpu.pipeline_mode<synchronous>, transform_indices = @transform_2, window_bounds = array<i64: 4, 1>}, {transform_indices = @transform_3, window_bounds = array<i64: 1, 4, 256>}]} {
    %c0 = arith.constant 0 : index
    %c0_0 = arith.constant 0 : index
    %0 = vector.load %arg3[%c0, %c0_0] : memref<4x4xf32, #tpu.memory_space<vmem>>, vector<4x4xf32>
    %c0_1 = arith.constant 0 : index
    %c0_2 = arith.constant 0 : index
    %c0_3 = arith.constant 0 : index
    %1 = vector.load %arg2[%c0_1, %c0_2, %c0_3] : memref<1x4x256xf32, #tpu.memory_space<vmem>>, vector<1x4x256xf32>
    %2 = vector.shape_cast %1 : vector<1x4x256xf32> to vector<4x256xf32>
    %cst = arith.constant dense<0.000000e+00> : vector<4x256xf32>
    %3 = tpu.matmul %0, %2, %cst {dimension_numbers = #tpu.dot_dimension_numbers<[1], [0], [0], [1], [0, 0, 1, 1], [], []>} : vector<4x4xf32>, vector<4x256xf32>, vector<4x256xf32> -> vector<4x256xf32>
    %c0_4 = arith.constant 0 : index
    %c0_5 = arith.constant 0 : index
    %4 = vector.load %arg4[%c0_4, %c0_5] : memref<4x1xf32, #tpu.memory_space<vmem>>, vector<4x1xf32>
    %5 = vector.broadcast %4 : vector<4x1xf32> to vector<4x256xf32>
    %6 = arith.addf %3, %5 : vector<4x256xf32>
    %cst_6 = arith.constant 0.000000e+00 : f32
    %7 = vector.broadcast %cst_6 : f32 to vector<4x256xf32>
    %8 = arith.maximumf %6, %7 : vector<4x256xf32>
    %c0_7 = arith.constant 0 : index
    %c0_8 = arith.constant 0 : index
    %c0_9 = arith.constant 0 : index
    %9 = vector.load %arg5[%c0_7, %c0_8, %c0_9] : memref<1x4x256xf32, #tpu.memory_space<vmem>>, vector<1x4x256xf32>
    %10 = vector.shape_cast %9 : vector<1x4x256xf32> to vector<4x256xf32>
    %11 = vector.shape_cast %8 : vector<4x256xf32> to vector<1x4x256xf32>
    tpu.vector_store %arg5[%c0_7, %c0_8, %c0_9], %11 {strides = array<i32>} : memref<1x4x256xf32, #tpu.memory_space<vmem>>, vector<1x4x256xf32>,
    return
  }
  func.func @transform_0(%arg0: i32, %arg1: i32) -> (i32, i32, i32) {
    %c0_i32 = arith.constant 0 : i32
    %c0_i32_0 = arith.constant 0 : i32
    return %arg0, %c0_i32, %arg1 : i32, i32, i32
  }
  func.func @transform_1(%arg0: i32, %arg1: i32) -> (i32, i32) {
    %c0_i32 = arith.constant 0 : i32
    %c0_i32_0 = arith.constant 0 : i32
    %c0_i32_1 = arith.constant 0 : i32
    return %c0_i32, %c0_i32_0 : i32, i32
  }
  func.func @transform_2(%arg0: i32, %arg1: i32) -> (i32, i32) {
    %c0_i32 = arith.constant 0 : i32
    %c0_i32_0 = arith.constant 0 : i32
    %c0_i32_1 = arith.constant 0 : i32
    return %c0_i32, %c0_i32_0 : i32, i32
  }
  func.func @transform_3(%arg0: i32, %arg1: i32) -> (i32, i32, i32) {
    %c0_i32 = arith.constant 0 : i32
    %c0_i32_0 = arith.constant 0 : i32
    return %arg0, %c0_i32, %arg1 : i32, i32, i32
  }
}

module attributes {stable_mosaic.version = 11 : i64} {
  func.func @_fu_conv_bn_relu_kernel(%arg0: i32, %arg1: i32, %arg2: memref<1x4x144xf32, #tpu.memory_space<vmem>>, %arg3: memref<1x4x144xf32, #tpu.memory_space<vmem>>, %arg4: memref<8x4xf32, #tpu.memory_space<vmem>>, %arg5: memref<8x4xf32, #tpu.memory_space<vmem>>, %arg6: memref<8x1xf32, #tpu.memory_space<vmem>>, %arg7: memref<1x4x144xf32, #tpu.memory_space<vmem>>, %arg8: memref<1x4x144xf32, #tpu.memory_space<vmem>>) attributes {dimension_semantics = [#tpu.dimension_semantics<parallel>, #tpu.dimension_semantics<parallel>], iteration_bounds = array<i64: 2, 1>, scalar_prefetch = 0 : i64, scratch_operands = 0 : i64, tpu.core_type = #tpu.core_type<tc>, window_params = [{transform_indices = @transform_0, window_bounds = array<i64: 1, 4, 144>}, {transform_indices = @transform_1, window_bounds = array<i64: 1, 4, 144>}, {pipeline_mode = #tpu.pipeline_mode<synchronous>, transform_indices = @transform_2, window_bounds = array<i64: 8, 4>}, {pipeline_mode = #tpu.pipeline_mode<synchronous>, transform_indices = @transform_3, window_bounds = array<i64: 8, 4>}, {pipeline_mode = #tpu.pipeline_mode<synchronous>, transform_indices = @transform_4, window_bounds = array<i64: 8, 1>}, {transform_indices = @transform_5, window_bounds = array<i64: 1, 4, 144>}, {transform_indices = @transform_6, window_bounds = array<i64: 1, 4, 144>}]} {
    %c0 = arith.constant 0 : index
    %c0_0 = arith.constant 0 : index
    %0 = vector.load %arg4[%c0, %c0_0] : memref<8x4xf32, #tpu.memory_space<vmem>>, vector<8x4xf32>
    %c0_1 = arith.constant 0 : index
    %c0_2 = arith.constant 0 : index
    %c0_3 = arith.constant 0 : index
    %1 = vector.load %arg2[%c0_1, %c0_2, %c0_3] : memref<1x4x144xf32, #tpu.memory_space<vmem>>, vector<1x4x144xf32>
    %2 = vector.shape_cast %1 : vector<1x4x144xf32> to vector<4x144xf32>
    %c0_4 = arith.constant 0 : index
    %c0_5 = arith.constant 0 : index
    %3 = vector.load %arg5[%c0_4, %c0_5] : memref<8x4xf32, #tpu.memory_space<vmem>>, vector<8x4xf32>
    %c0_6 = arith.constant 0 : index
    %c0_7 = arith.constant 0 : index
    %c0_8 = arith.constant 0 : index
    %4 = vector.load %arg3[%c0_6, %c0_7, %c0_8] : memref<1x4x144xf32, #tpu.memory_space<vmem>>, vector<1x4x144xf32>
    %5 = vector.shape_cast %4 : vector<1x4x144xf32> to vector<4x144xf32>
    %cst = arith.constant dense<0.000000e+00> : vector<8x144xf32>
    %6 = tpu.matmul %0, %2, %cst {dimension_numbers = #tpu.dot_dimension_numbers<[1], [0], [0], [1], [0, 0, 1, 1], [], []>} : vector<8x4xf32>, vector<4x144xf32>, vector<8x144xf32> -> vector<8x144xf32>
    %cst_9 = arith.constant dense<0.000000e+00> : vector<8x144xf32>
    %7 = tpu.matmul %3, %5, %cst_9 {dimension_numbers = #tpu.dot_dimension_numbers<[1], [0], [0], [1], [0, 0, 1, 1], [], []>} : vector<8x4xf32>, vector<4x144xf32>, vector<8x144xf32> -> vector<8x144xf32>
    %8 = arith.addf %6, %7 : vector<8x144xf32>
    %c0_10 = arith.constant 0 : index
    %c0_11 = arith.constant 0 : index
    %9 = vector.load %arg6[%c0_10, %c0_11] : memref<8x1xf32, #tpu.memory_space<vmem>>, vector<8x1xf32>
    %10 = vector.broadcast %9 : vector<8x1xf32> to vector<8x144xf32>
    %11 = arith.addf %8, %10 : vector<8x144xf32>
    %cst_12 = arith.constant 0.000000e+00 : f32
    %12 = vector.broadcast %cst_12 : f32 to vector<8x144xf32>
    %13 = arith.maximumf %11, %12 : vector<8x144xf32>
    %14 = vector.extract_strided_slice %13 {offsets = [0, 0], sizes = [4, 144], strides = [1, 1]} : vector<8x144xf32> to vector<4x144xf32>
    %c0_13 = arith.constant 0 : index
    %c0_14 = arith.constant 0 : index
    %c0_15 = arith.constant 0 : index
    %15 = vector.load %arg7[%c0_13, %c0_14, %c0_15] : memref<1x4x144xf32, #tpu.memory_space<vmem>>, vector<1x4x144xf32>
    %16 = vector.shape_cast %15 : vector<1x4x144xf32> to vector<4x144xf32>
    %17 = vector.shape_cast %14 : vector<4x144xf32> to vector<1x4x144xf32>
    tpu.vector_store %arg7[%c0_13, %c0_14, %c0_15], %17 {strides = array<i32>} : memref<1x4x144xf32, #tpu.memory_space<vmem>>, vector<1x4x144xf32>,
    %18 = vector.extract_strided_slice %13 {offsets = [4, 0], sizes = [4, 144], strides = [1, 1]} : vector<8x144xf32> to vector<4x144xf32>
    %c0_16 = arith.constant 0 : index
    %c0_17 = arith.constant 0 : index
    %c0_18 = arith.constant 0 : index
    %19 = vector.load %arg8[%c0_16, %c0_17, %c0_18] : memref<1x4x144xf32, #tpu.memory_space<vmem>>, vector<1x4x144xf32>
    %20 = vector.shape_cast %19 : vector<1x4x144xf32> to vector<4x144xf32>
    %21 = vector.shape_cast %18 : vector<4x144xf32> to vector<1x4x144xf32>
    tpu.vector_store %arg8[%c0_16, %c0_17, %c0_18], %21 {strides = array<i32>} : memref<1x4x144xf32, #tpu.memory_space<vmem>>, vector<1x4x144xf32>,
    return
  }
  func.func @transform_0(%arg0: i32, %arg1: i32) -> (i32, i32, i32) {
    %c0_i32 = arith.constant 0 : i32
    %c0_i32_0 = arith.constant 0 : i32
    return %arg0, %c0_i32, %arg1 : i32, i32, i32
  }
  func.func @transform_1(%arg0: i32, %arg1: i32) -> (i32, i32, i32) {
    %c0_i32 = arith.constant 0 : i32
    %c0_i32_0 = arith.constant 0 : i32
    return %arg0, %c0_i32, %arg1 : i32, i32, i32
  }
  func.func @transform_2(%arg0: i32, %arg1: i32) -> (i32, i32) {
    %c0_i32 = arith.constant 0 : i32
    %c0_i32_0 = arith.constant 0 : i32
    %c0_i32_1 = arith.constant 0 : i32
    return %c0_i32, %c0_i32_0 : i32, i32
  }
  func.func @transform_3(%arg0: i32, %arg1: i32) -> (i32, i32) {
    %c0_i32 = arith.constant 0 : i32
    %c0_i32_0 = arith.constant 0 : i32
    %c0_i32_1 = arith.constant 0 : i32
    return %c0_i32, %c0_i32_0 : i32, i32
  }
  func.func @transform_4(%arg0: i32, %arg1: i32) -> (i32, i32) {
    %c0_i32 = arith.constant 0 : i32
    %c0_i32_0 = arith.constant 0 : i32
    %c0_i32_1 = arith.constant 0 : i32
    return %c0_i32, %c0_i32_0 : i32, i32
  }
  func.func @transform_5(%arg0: i32, %arg1: i32) -> (i32, i32, i32) {
    %c0_i32 = arith.constant 0 : i32
    %c0_i32_0 = arith.constant 0 : i32
    return %arg0, %c0_i32, %arg1 : i32, i32, i32
  }
  func.func @transform_6(%arg0: i32, %arg1: i32) -> (i32, i32, i32) {
    %c0_i32 = arith.constant 0 : i32
    %c0_i32_0 = arith.constant 0 : i32
    return %arg0, %c0_i32, %arg1 : i32, i32, i32
  }
}

module attributes {stable_mosaic.version = 11 : i64} {
  func.func @_add_pw_conv_kernel(%arg0: i32, %arg1: i32, %arg2: memref<1x4x256xf32, #tpu.memory_space<vmem>>, %arg3: memref<1x4x256xf32, #tpu.memory_space<vmem>>, %arg4: memref<8x4xf32, #tpu.memory_space<vmem>>, %arg5: memref<1x8x256xf32, #tpu.memory_space<vmem>>) attributes {dimension_semantics = [#tpu.dimension_semantics<parallel>, #tpu.dimension_semantics<parallel>], iteration_bounds = array<i64: 2, 1>, scalar_prefetch = 0 : i64, scratch_operands = 0 : i64, tpu.core_type = #tpu.core_type<tc>, window_params = [{transform_indices = @transform_0, window_bounds = array<i64: 1, 4, 256>}, {transform_indices = @transform_1, window_bounds = array<i64: 1, 4, 256>}, {pipeline_mode = #tpu.pipeline_mode<synchronous>, transform_indices = @transform_2, window_bounds = array<i64: 8, 4>}, {transform_indices = @transform_3, window_bounds = array<i64: 1, 8, 256>}]} {
    %c0 = arith.constant 0 : index
    %c0_0 = arith.constant 0 : index
    %c0_1 = arith.constant 0 : index
    %0 = vector.load %arg2[%c0, %c0_0, %c0_1] : memref<1x4x256xf32, #tpu.memory_space<vmem>>, vector<1x4x256xf32>
    %1 = vector.shape_cast %0 : vector<1x4x256xf32> to vector<4x256xf32>
    %c0_2 = arith.constant 0 : index
    %c0_3 = arith.constant 0 : index
    %c0_4 = arith.constant 0 : index
    %2 = vector.load %arg3[%c0_2, %c0_3, %c0_4] : memref<1x4x256xf32, #tpu.memory_space<vmem>>, vector<1x4x256xf32>
    %3 = vector.shape_cast %2 : vector<1x4x256xf32> to vector<4x256xf32>
    %4 = arith.addf %1, %3 : vector<4x256xf32>
    %c0_5 = arith.constant 0 : index
    %c0_6 = arith.constant 0 : index
    %5 = vector.load %arg4[%c0_5, %c0_6] : memref<8x4xf32, #tpu.memory_space<vmem>>, vector<8x4xf32>
    %cst = arith.constant dense<0.000000e+00> : vector<8x256xf32>
    %6 = tpu.matmul %5, %4, %cst {dimension_numbers = #tpu.dot_dimension_numbers<[1], [0], [0], [1], [0, 0, 1, 1], [], []>} : vector<8x4xf32>, vector<4x256xf32>, vector<8x256xf32> -> vector<8x256xf32>
    %c0_7 = arith.constant 0 : index
    %c0_8 = arith.constant 0 : index
    %c0_9 = arith.constant 0 : index
    %7 = vector.load %arg5[%c0_7, %c0_8, %c0_9] : memref<1x8x256xf32, #tpu.memory_space<vmem>>, vector<1x8x256xf32>
    %8 = vector.shape_cast %7 : vector<1x8x256xf32> to vector<8x256xf32>
    %9 = vector.shape_cast %6 : vector<8x256xf32> to vector<1x8x256xf32>
    tpu.vector_store %arg5[%c0_7, %c0_8, %c0_9], %9 {strides = array<i32>} : memref<1x8x256xf32, #tpu.memory_space<vmem>>, vector<1x8x256xf32>,
    return
  }
  func.func @transform_0(%arg0: i32, %arg1: i32) -> (i32, i32, i32) {
    %c0_i32 = arith.constant 0 : i32
    %c0_i32_0 = arith.constant 0 : i32
    return %arg0, %c0_i32, %arg1 : i32, i32, i32
  }
  func.func @transform_1(%arg0: i32, %arg1: i32) -> (i32, i32, i32) {
    %c0_i32 = arith.constant 0 : i32
    %c0_i32_0 = arith.constant 0 : i32
    return %arg0, %c0_i32, %arg1 : i32, i32, i32
  }
  func.func @transform_2(%arg0: i32, %arg1: i32) -> (i32, i32) {
    %c0_i32 = arith.constant 0 : i32
    %c0_i32_0 = arith.constant 0 : i32
    %c0_i32_1 = arith.constant 0 : i32
    return %c0_i32, %c0_i32_0 : i32, i32
  }
  func.func @transform_3(%arg0: i32, %arg1: i32) -> (i32, i32, i32) {
    %c0_i32 = arith.constant 0 : i32
    %c0_i32_0 = arith.constant 0 : i32
    return %arg0, %c0_i32, %arg1 : i32, i32, i32
  }
}

</mosaic_0001>

<llo_original>
// kernel: spectral_transform.3
$region0: #{spectral_transform.3}
  #allocation0 [shape = 'u32[]', space=smem, size = 0x4, offset = 0x4, fixed_abs, tag = 'smem constant byte address 0x4 - core index']
  #allocation1 [shape = 'u32[144,128]{1,0:T(1,128)}', space=vmem, size = 0x12000, scoped, tag = 'internal scratch']
  %s0 = inlined_call_operand.vmem [shape: f32[2,4,256], index: 0, kind: input, shape index: {}]
  %s1 = inlined_call_operand.vmem [shape: f32[4,4], index: 1, kind: input, shape index: {}]
  %s2 = inlined_call_operand.vmem [shape: f32[4,1], index: 2, kind: input, shape index: {}]
  %s3 = inlined_call_operand.vmem [shape: f32[2,4,256], index: 3, kind: output, shape index: {}]
  %s4 = sld [smem:[#allocation0]]
  $region45: #{spectral_transform.3} parent=0
    _
  %s6 = ssub.s32 1, %s4
  %s7 = scalar_select 0, %s6, %s4
  loop: start=0, step=1, limit=4
  $region2: #{spectral_transform.3} parent=0 // loop_pre_header
    _
  $region3: #{spectral_transform.3} parent=0 // loop_header
    %s9 = sphi 0, %s13
    %p10 = scmp.ge.s32.totalorder %s9, 4
    %s16 = sphi 0, %s28
    %s17 = sphi 0, %s24
    %s18 = sphi 0, %s16
    %s19 = sphi 0, %s17
    %s20 = sphi 0, %s18
    %s21 = sphi 0, %s19
    %s33 = sphi 0, %s35
    %s36 = sphi 0, %s33
    %s37 = sphi 0, %s36
    %s53 = sphi 0, %s37
    %s57 = sphi 0, %s57
    %s59 = sphi 0, %s57
    %s60 = sphi 0, %s59
    %s74 = sphi 0, %s60
    %s78 = sphi 0, %s78
    %s80 = sphi 0, %s78
    %s81 = sphi 0, %s80
    %s95 = sphi 0, %s81
    %s103 = sphi 0, %s105
    %s106 = sphi 0, %s103
    %s107 = sphi 0, %s106
    %s123 = sphi 0, %s107
  $region4: #{spectral_transform.3} parent=0 // loop_header_branch
    %12 = sbr.rel (%p10) target = $region8
  $region5: #{spectral_transform.3} parent=0 // loop_body
    %s14 = ssub.s32 %s9, 1
    %s15 = ssub.s32 %s9, 2
    %s22 = sadd.s32 1, %s17
    %p23 = scmp.ge.s32.totalorder %s22, 1
    %s24 = scalar_select %p23, 0, %s22
    %s25 = sadd.s32 1, %s16
    %s26 = scalar_select %p23, %s25, %s16
    %p27 = scmp.ge.s32.totalorder %s26, 2
    %s28 = scalar_select %p27, 0, %s26
    %s29 = ssub.s32 %s16, %s28
    %s30 = ssub.s32 %s17, %s24
    %s31 = sor.u32 %s29, %s30
    %p32 = scmp.eq.s32.totalorder %s31, 0
    %s34 = sadd.s32 %s33, 1
    %s35 = scalar_select %p32, %s33, %s34
    %p38 = pneg %p32
    %p39 = scmp.eq.s32.totalorder %s9, 1
    %p40 = por %p38, %p39
    %p41 = scmp.ne.s32.totalorder %s33, %s36
    %p42 = scmp.eq.s32.totalorder %s9, 0
    %p43 = por %p41, %p42
    %p44 = scmp.ne.s32.totalorder %s33, %s36
    %p45 = scmp.eq.s32.totalorder %s14, 1
    %p46 = por %p44, %p45
    %p47 = scmp.ne.s32.totalorder %s36, %s37
    %p48 = scmp.eq.s32.totalorder %s14, 0
    %p49 = por %p47, %p48
    %p50 = scmp.ne.s32.totalorder %s36, %s37
    %p51 = scmp.eq.s32.totalorder %s15, 1
    %p52 = por %p50, %p51
    %p54 = scmp.ne.s32.totalorder %s37, %s53
    %p55 = scmp.eq.s32.totalorder %s15, 0
    %p56 = por %p54, %p55
    %s58 = sadd.s32 %s57, 1
    %p61 = scmp.eq.s32.totalorder %s9, 1
    %p62 = scmp.ne.s32.totalorder %s57, %s59
    %p63 = scmp.eq.s32.totalorder %s9, 0
    %p64 = por %p62, %p63
    %p65 = scmp.ne.s32.totalorder %s57, %s59
    %p66 = scmp.eq.s32.totalorder %s14, 1
    %p67 = por %p65, %p66
    %p68 = scmp.ne.s32.totalorder %s59, %s60
    %p69 = scmp.eq.s32.totalorder %s14, 0
    %p70 = por %p68, %p69
    %p71 = scmp.ne.s32.totalorder %s59, %s60
    %p72 = scmp.eq.s32.totalorder %s15, 1
    %p73 = por %p71, %p72
    %p75 = scmp.ne.s32.totalorder %s60, %s74
    %p76 = scmp.eq.s32.totalorder %s15, 0
    %p77 = por %p75, %p76
    %s79 = sadd.s32 %s78, 1
    %p82 = scmp.eq.s32.totalorder %s9, 1
    %p83 = scmp.ne.s32.totalorder %s78, %s80
    %p84 = scmp.eq.s32.totalorder %s9, 0
    %p85 = por %p83, %p84
    %p86 = scmp.ne.s32.totalorder %s78, %s80
    %p87 = scmp.eq.s32.totalorder %s14, 1
    %p88 = por %p86, %p87
    %p89 = scmp.ne.s32.totalorder %s80, %s81
    %p90 = scmp.eq.s32.totalorder %s14, 0
    %p91 = por %p89, %p90
    %p92 = scmp.ne.s32.totalorder %s80, %s81
    %p93 = scmp.eq.s32.totalorder %s15, 1
    %p94 = por %p92, %p93
    %p96 = scmp.ne.s32.totalorder %s81, %s95
    %p97 = scmp.eq.s32.totalorder %s15, 0
    %p98 = por %p96, %p97
    %s99 = ssub.s32 %s16, %s28
    %s100 = ssub.s32 %s17, %s24
    %s101 = sor.u32 %s99, %s100
    %p102 = scmp.eq.s32.totalorder %s101, 0
    %s104 = sadd.s32 %s103, 1
    %s105 = scalar_select %p102, %s103, %s104
    %p108 = pneg %p102
    %p109 = scmp.eq.s32.totalorder %s9, 1
    %p110 = por %p108, %p109
    %p111 = scmp.ne.s32.totalorder %s103, %s106
    %p112 = scmp.eq.s32.totalorder %s9, 0
    %p113 = por %p111, %p112
    %p114 = scmp.ne.s32.totalorder %s103, %s106
    %p115 = scmp.eq.s32.totalorder %s14, 1
    %p116 = por %p114, %p115
    %p117 = scmp.ne.s32.totalorder %s106, %s107
    %p118 = scmp.eq.s32.totalorder %s14, 0
    %p119 = por %p117, %p118
    %p120 = scmp.ne.s32.totalorder %s106, %s107
    %p121 = scmp.eq.s32.totalorder %s15, 1
    %p122 = por %p120, %p121
    %p124 = scmp.ne.s32.totalorder %s107, %s123
    %p125 = scmp.eq.s32.totalorder %s15, 0
    %p126 = por %p124, %p125
    %p127 = scmp.le.s32.totalorder 1, %s9
    %p128 = scmp.lt.s32.totalorder %s9, 3
    %p129 = pnand %p127, %p128
    %p130 = pneg %p129
    // Predicated region
    $region9: #{spectral_transform.3} parent=5 // pred_check
      _
    $region10: #{spectral_transform.3} parent=5 // pred_check_branch
      %132 = sbr.rel (%p129) target = $region12
    $region11: #{spectral_transform.3} parent=5 // pred_region
      %s133 = ssub.s32 %s9, 1
      // Predicated region
      $region13: #{spectral_transform.3} parent=11 // pred_check
        %p134 = pneg %p70
      $region14: #{spectral_transform.3} parent=11 // pred_check_branch
        %136 = sbr.rel (%p134) target = $region16
      $region15: #{spectral_transform.3} parent=11 // pred_region
        _
      $region16: #{spectral_transform.3} parent=11 // pred_fallthru
        _
      // Predicated region
      $region17: #{spectral_transform.3} parent=11 // pred_check
        %p137 = pneg %p91
      $region18: #{spectral_transform.3} parent=11 // pred_check_branch
        %139 = sbr.rel (%p137) target = $region20
      $region19: #{spectral_transform.3} parent=11 // pred_region
        _
      $region20: #{spectral_transform.3} parent=11 // pred_fallthru
        _
    $region12: #{spectral_transform.3} parent=5 // pred_fallthru
      _
    %p140 = scmp.lt.s32.totalorder %s9, 2
    // Predicated region
    $region21: #{spectral_transform.3} parent=5 // pred_check
      %p141 = pneg %p140
    $region22: #{spectral_transform.3} parent=5 // pred_check_branch
      %143 = sbr.rel (%p141) target = $region24
    $region23: #{spectral_transform.3} parent=5 // pred_region
      // Predicated region
      $region25: #{spectral_transform.3} parent=23 // pred_check
        %p144 = pneg %p43
      $region26: #{spectral_transform.3} parent=23 // pred_check_branch
        %146 = sbr.rel (%p144) target = $region28
      $region27: #{spectral_transform.3} parent=23 // pred_region
        %s147 = smul.u32 2, %s17
        %p148 = scmp.lt.s32.totalorder %s16, 1
        %s149 = scalar_select %p148, %s16, 1
        %p150 = scmp.lt.s32.totalorder %s147, 1
        %s151 = scalar_select %p150, %s147, 1
        %s152 = smul.addr %s149, 2
        %s153 = sadd.s32 %s151, %s152
        %s154 = smul.addr %s153, 4
        %s155 = scalar_lea.vmem %s0, %s154
        %s156 = smul.u32 2, %s17
      $region28: #{spectral_transform.3} parent=23 // pred_fallthru
        _
    $region24: #{spectral_transform.3} parent=5 // pred_fallthru
      _
    %p157 = scmp.le.s32.totalorder 1, %s9
    %p158 = scmp.lt.s32.totalorder %s9, 3
    %p159 = pnand %p157, %p158
    %p160 = pneg %p159
    // Predicated region
    $region29: #{spectral_transform.3} parent=5 // pred_check
      _
    $region30: #{spectral_transform.3} parent=5 // pred_check_branch
      %162 = sbr.rel (%p159) target = $region32
    $region31: #{spectral_transform.3} parent=5 // pred_region
      %s163 = ssub.s32 %s9, 1
      %s164 = smul.u32 2, %s19
      %p165 = scmp.lt.s32.totalorder %s18, 1
      %s166 = scalar_select %p165, %s18, 1
      %p167 = scmp.lt.s32.totalorder %s164, 1
      %s168 = scalar_select %p167, %s164, 1
      %s169 = smul.addr %s166, 2
      %s170 = sadd.s32 %s168, %s169
      %s171 = smul.addr %s170, 4
      %s172 = scalar_lea.vmem %s0, %s171
      %p173 = pneg %p49
      %p174 = pneg %p46
      %p175 = pneg %p70
      %p176 = pneg %p67
      %p177 = pneg %p91
      %p178 = pneg %p88
      %p179 = pneg %p119
      %p180 = pneg %p116
      %s181 = smul.u32 2, %s19
      %p182 = scmp.lt.s32.totalorder %s18, 1
      %s183 = scalar_select %p182, %s18, 1
      %p184 = scmp.lt.s32.totalorder %s181, 1
      %s185 = scalar_select %p184, %s181, 1
      %s186 = smul.addr %s183, 2
      %s187 = sadd.s32 %s185, %s186
      %s188 = smul.addr %s187, 4
      %s189 = scalar_lea.vmem %s3, %s188
      %s190 = smul.u32 2, %s19
      %p191 = scmp.lt.s32.totalorder %s18, 1
      %s192 = scalar_select %p191, %s18, 1
      %p193 = scmp.lt.s32.totalorder %s190, 1
      %s194 = scalar_select %p193, %s190, 1
      %s195 = smul.addr %s192, 2
      %s196 = sadd.s32 %s194, %s195
      %s197 = smul.addr %s196, 4
      %s198 = scalar_lea.vmem %s0, %s197
      %s199 = smul.u32 2, %s19
      %s200 = smul.u32 2, %s19
      %p201 = scmp.lt.s32.totalorder %s18, 1
      %s202 = scalar_select %p201, %s18, 1
      %p203 = scmp.lt.s32.totalorder %s200, 1
      %s204 = scalar_select %p203, %s200, 1
      %s205 = smul.addr %s202, 2
      %s206 = sadd.s32 %s204, %s205
      %s207 = smul.addr %s206, 4
      %s208 = scalar_lea.vmem %s3, %s207
      %s209 = smul.u32 2, %s19
      %v210 = vld [vmem:[%s1] sm:$0xf]
      %v211 = vld [vmem:[%s198] sm:$0xff]
      %v212 = vld [vmem:[%s2] sm:$0xf]
      %214 = vset.pattern.permute.xlu0 0
      %215 = vperm.xlu0 %214, %v212
      %v216 = vpop.permute.xlu0 %215
      %v219 = vcombine.high %v211, %v211
      %vm220 = vcmask 31744
      %v222 = vsel %vm220, %v210, 0
      %vm224 = vcmask 1043456
      %v225 = vsel %vm224, %v211, 0
      %v227 = vsel %vm224, %v219, 0
      %229 = vmatprep.subr.mxu0 0.0
      %230 = vmatpush1.msra.mxu0 0.0
      %231 = vmatprep.subr.mxu0 0.0
      %232 = vmatpush1.msra.mxu0 0.0
      %233 = vmatprep.subr.mxu0 0.0
      %234 = vmatpush1.msra.mxu0 0.0
      %235 = vmatprep.subr.mxu0 0.0
      %236 = vmatpush1.msra.mxu0 0.0
      %237 = vmatprep.subr.mxu0 0.0
      %238 = vmatpush1.msra.mxu0 0.0
      %239 = vmatprep.subr.mxu0 0.0
      %240 = vmatpush1.msra.mxu0 0.0
      %241 = vmatprep.subr.mxu0 0.0
      %242 = vmatpush1.msra.mxu0 0.0
      %243 = vmatprep.subr.mxu0 0.0
      %244 = vmatpush1.msra.mxu0 0.0
      %245 = vmatprep.subr.mxu0 0.0
      %246 = vmatpush1.msra.mxu0 0.0
      %247 = vmatprep.subr.mxu0 0.0
      %248 = vmatpush1.msra.mxu0 0.0
      %249 = vmatprep.subr.mxu0 0.0
      %250 = vmatpush1.msra.mxu0 0.0
      %251 = vmatprep.subr.mxu0 0.0
      %252 = vmatpush1.msra.mxu0 0.0
      %253 = vmatprep.subr.mxu0 0.0
      %254 = vmatpush1.msra.mxu0 0.0
      %255 = vmatprep.subr.mxu0 0.0
      %256 = vmatpush1.msra.mxu0 0.0
      %257 = vmatprep.subr.mxu0 0.0
      %258 = vmatpush1.msra.mxu0 0.0
      %259 = vmatprep.subr.mxu0 %v227
      %260 = vmatpush1.msra.mxu0 %v225
      %261 = vmatprep.subr.mxu0 0.0
      %262 = vmatpush2.msra.mxu0 0.0
      %263 = vmatprep.subr.mxu0 0.0
      %264 = vmatpush2.msra.mxu0 0.0
      %265 = vmatprep.subr.mxu0 0.0
      %266 = vmatpush2.msra.mxu0 0.0
      %267 = vmatprep.subr.mxu0 0.0
      %268 = vmatpush2.msra.mxu0 0.0
      %269 = vmatprep.subr.mxu0 0.0
      %270 = vmatpush2.msra.mxu0 0.0
      %271 = vmatprep.subr.mxu0 0.0
      %272 = vmatpush2.msra.mxu0 0.0
      %273 = vmatprep.subr.mxu0 0.0
      %274 = vmatpush2.msra.mxu0 0.0
      %275 = vmatprep.subr.mxu0 0.0
      %276 = vmatpush2.msra.mxu0 0.0
      %277 = vmatprep.subr.mxu0 0.0
      %278 = vmatpush2.msra.mxu0 0.0
      %279 = vmatprep.subr.mxu0 0.0
      %280 = vmatpush2.msra.mxu0 0.0
      %281 = vmatprep.subr.mxu0 0.0
      %282 = vmatpush2.msra.mxu0 0.0
      %283 = vmatprep.subr.mxu0 0.0
      %284 = vmatpush2.msra.mxu0 0.0
      %285 = vmatprep.subr.mxu0 0.0
      %286 = vmatpush2.msra.mxu0 0.0
      %287 = vmatprep.subr.mxu0 0.0
      %288 = vmatpush2.msra.mxu0 0.0
      %289 = vmatprep.subr.mxu0 0.0
      %290 = vmatpush2.msra.mxu0 0.0
      %291 = vmatprep.subr.mxu0 0.0
      %292 = vmatpush2.msra.mxu0 0.0
      %293 = vmatprep.mubr.f32.mxu0 0.0
      %294 = vmatmul.mubr.f32.gmra.mxu0 %v222
      %v295 = vpop.f32.mrf.mxu0
      %v296 = vadd.f32 %v216, %v295
      %v297 = vpop.f32.mrf.mxu0
      %v298 = vadd.f32 %v216, %v297
      %299 = vdwg.mxu0
      %v300 = vmax.f32 %v296, 0.0
      %v301 = vmax.f32 %v298, 0.0
      %v304 = vcombine.low %v300, %v301
      %306 = vst [vmem:[%s208] sm:$0xff] %v304
      %s307 = smul.u32 2, %s19
      %p308 = scmp.lt.s32.totalorder %s18, 1
      %s309 = scalar_select %p308, %s18, 1
      %p310 = scmp.lt.s32.totalorder %s307, 1
      %s311 = scalar_select %p310, %s307, 1
      %s312 = smul.addr %s309, 2
      %s313 = sadd.s32 %s311, %s312
      %s314 = smul.addr %s313, 4
      %s315 = scalar_lea.vmem %s3, %s314
      // Predicated region
      $region33: #{spectral_transform.3} parent=31 // pred_check
        %p316 = pneg %p116
      $region34: #{spectral_transform.3} parent=31 // pred_check_branch
        %318 = sbr.rel (%p316) target = $region36
      $region35: #{spectral_transform.3} parent=31 // pred_region
        %s319 = smul.u32 2, %s19
      $region36: #{spectral_transform.3} parent=31 // pred_fallthru
        _
    $region32: #{spectral_transform.3} parent=5 // pred_fallthru
      _
    %p320 = scmp.le.s32.totalorder 2, %s9
    // Predicated region
    $region37: #{spectral_transform.3} parent=5 // pred_check
      %p321 = pneg %p320
    $region38: #{spectral_transform.3} parent=5 // pred_check_branch
      %323 = sbr.rel (%p321) target = $region40
    $region39: #{spectral_transform.3} parent=5 // pred_region
      %s324 = ssub.s32 %s9, 2
      // Predicated region
      $region41: #{spectral_transform.3} parent=39 // pred_check
        %p325 = pneg %p122
      $region42: #{spectral_transform.3} parent=39 // pred_check_branch
        %327 = sbr.rel (%p325) target = $region44
      $region43: #{spectral_transform.3} parent=39 // pred_region
        %s328 = smul.u32 2, %s21
        %p329 = scmp.lt.s32.totalorder %s20, 1
        %s330 = scalar_select %p329, %s20, 1
        %p331 = scmp.lt.s32.totalorder %s328, 1
        %s332 = scalar_select %p331, %s328, 1
        %s333 = smul.addr %s330, 2
        %s334 = sadd.s32 %s332, %s333
        %s335 = smul.addr %s334, 4
        %s336 = scalar_lea.vmem %s3, %s335
      $region44: #{spectral_transform.3} parent=39 // pred_fallthru
        _
    $region40: #{spectral_transform.3} parent=5 // pred_fallthru
      _
  $region6: #{spectral_transform.3} parent=0 // loop_footer
    %s13 = sadd.s32 1, %s9
  $region7: #{spectral_transform.3} parent=0 // loop_footer_branch
    %8 = sbr.rel target = $region3
  $region8: #{spectral_transform.3} parent=0 // loop_exit
    _

// kernel: reverse.0
$region0: #{reverse.0}
  %s0 = inlined_call_operand.vmem [shape: f32[2,4,16,7], index: 0, kind: input, shape index: {}]
  %s1 = inlined_call_operand.vmem [shape: f32[2,4,16,7], index: 1, kind: output, shape index: {}]
  $region1: #{reverse.0} parent=0
    #allocation0 [shape = 'u8[65536]{0}', space=vmem, size = 0x10000, scoped, tag = 'operand span for operand 0']
    #allocation1 [shape = 'u8[32768]{0}', space=vmem, size = 0x8000, scoped, tag = 'operand span for operand 1']
    %s2 = scalar_lea.vmem [#allocation0], 8
    // Predicated region
    $region2: #{reverse.0} parent=1 // pred_check
      _
    $region3: #{reverse.0} parent=1 // pred_check_branch
      %4 = sbr.rel (0) target = $region5
    $region4: #{reverse.0} parent=1 // pred_region
      // Predicated region
      $region6: #{reverse.0} parent=4 // pred_check
        _
      $region7: #{reverse.0} parent=4 // pred_check_branch
        %6 = sbr.rel (0) target = $region9
      $region8: #{reverse.0} parent=4 // pred_region
        // Predicated region
        $region21: #{reverse.0} parent=8 // pred_check
          _
        $region22: #{reverse.0} parent=8 // pred_check_branch
          %36 = sbr.rel (0) target = $region24
        $region23: #{reverse.0} parent=8 // pred_region
          loop: start=0, step=1, limit=1
          $region25: #{reverse.0} parent=23 // loop_pre_header
            _
          $region26: #{reverse.0} parent=23 // loop_header
            %s38 = sphi 0, %s42
            %p39 = scmp.ge.s32.totalorder %s38, 1
            %s43 = sphi %s0, %s0
            %s44 = sphi %s2, %s2
          $region27: #{reverse.0} parent=23 // loop_header_branch
            %41 = sbr.rel (%p39) target = $region31
          $region28: #{reverse.0} parent=23 // loop_body
            %v45 = vld [vmem:[%s43] sm:$0xff]
            %46 = vst [vmem:[%s44] sm:$0xff] %v45
            %v47 = vld [vmem:[%s43 + $0x8] sm:$0xff]
            %48 = vst [vmem:[%s44 + $0x10] sm:$0xff] %v47
            %v49 = vld [vmem:[%s43 + $0x10] sm:$0xff]
            %50 = vst [vmem:[%s44 + $0x20] sm:$0xff] %v49
            %v51 = vld [vmem:[%s43 + $0x18] sm:$0xff]
            %52 = vst [vmem:[%s44 + $0x30] sm:$0xff] %v51
            %v53 = vld [vmem:[%s43 + $0x20] sm:$0xff]
            %54 = vst [vmem:[%s44 + $0x40] sm:$0xff] %v53
            %v55 = vld [vmem:[%s43 + $0x28] sm:$0xff]
            %56 = vst [vmem:[%s44 + $0x50] sm:$0xff] %v55
            %v57 = vld [vmem:[%s43 + $0x30] sm:$0xff]
            %58 = vst [vmem:[%s44 + $0x60] sm:$0xff] %v57
            %v59 = vld [vmem:[%s43 + $0x38] sm:$0xff]
            %60 = vst [vmem:[%s44 + $0x70] sm:$0xff] %v59
          $region29: #{reverse.0} parent=23 // loop_footer
            %s42 = sadd.s32 1, %s38
          $region30: #{reverse.0} parent=23 // loop_footer_branch
            %37 = sbr.rel target = $region26
          $region31: #{reverse.0} parent=23 // loop_exit
            _
        $region24: #{reverse.0} parent=8 // pred_fallthru
          _
        // Predicated region
        $region32: #{reverse.0} parent=8 // pred_check
          _
        $region33: #{reverse.0} parent=8 // pred_check_branch
          %62 = sbr.rel target = $region35
        $region34: #{reverse.0} parent=8 // pred_region
          _
        $region35: #{reverse.0} parent=8 // pred_fallthru
          _
      $region9: #{reverse.0} parent=4 // pred_fallthru
        _
      // Predicated region
      $region10: #{reverse.0} parent=4 // pred_check
        _
      $region11: #{reverse.0} parent=4 // pred_check_branch
        %8 = sbr.rel target = $region13
      $region12: #{reverse.0} parent=4 // pred_region
        %s10 = ssub.s32 256, 1
        loop: start=0, step=1, limit=1
        $region14: #{reverse.0} parent=12 // loop_pre_header
          _
        $region15: #{reverse.0} parent=12 // loop_header
          %s12 = sphi 0, %s16
          %p13 = scmp.ge.s32.totalorder %s12, 1
          %s17 = sphi %s0, %s0
          %s18 = sphi %s2, %s2
        $region16: #{reverse.0} parent=12 // loop_header_branch
          %15 = sbr.rel (%p13) target = $region20
        $region17: #{reverse.0} parent=12 // loop_body
          %v19 = vld [vmem:[%s17] sm:%s10]
          %20 = vst [vmem:[%s18] sm:%s10] %v19
          %v21 = vld [vmem:[%s17 + $0x8] sm:%s10]
          %22 = vst [vmem:[%s18 + $0x10] sm:%s10] %v21
          %v23 = vld [vmem:[%s17 + $0x10] sm:%s10]
          %24 = vst [vmem:[%s18 + $0x20] sm:%s10] %v23
          %v25 = vld [vmem:[%s17 + $0x18] sm:%s10]
          %26 = vst [vmem:[%s18 + $0x30] sm:%s10] %v25
          %v27 = vld [vmem:[%s17 + $0x20] sm:%s10]
          %28 = vst [vmem:[%s18 + $0x40] sm:%s10] %v27
          %v29 = vld [vmem:[%s17 + $0x28] sm:%s10]
          %30 = vst [vmem:[%s18 + $0x50] sm:%s10] %v29
          %v31 = vld [vmem:[%s17 + $0x30] sm:%s10]
          %32 = vst [vmem:[%s18 + $0x60] sm:%s10] %v31
          %v33 = vld [vmem:[%s17 + $0x38] sm:%s10]
          %34 = vst [vmem:[%s18 + $0x70] sm:%s10] %v33
        $region18: #{reverse.0} parent=12 // loop_footer
          %s16 = sadd.s32 1, %s12
        $region19: #{reverse.0} parent=12 // loop_footer_branch
          %11 = sbr.rel target = $region15
        $region20: #{reverse.0} parent=12 // loop_exit
          _
      $region13: #{reverse.0} parent=4 // pred_fallthru
        _
    $region5: #{reverse.0} parent=1 // pred_fallthru
      _
    %63 = vnop
    %s64 = scalar_lea.vmem [#allocation0], 7
    %v65 = vld [vmem:[%s64] ss:$-1 sm:$0xff]
    %v66 = vrot.slane %v65, 1
    %67 = vst [vmem:[#allocation1] sm:$0xff] %v66
    %s68 = scalar_lea.vmem [#allocation0], 8
    %s69 = scalar_lea.vmem %s68, 7 [#allocation0]
    %v70 = vld [vmem:[%s69] ss:$-1 sm:$0xff]
    %v71 = vrot.slane %v70, 1
    %v72 = vlaneseq
    %v73 = vshrl.u32 %v72, 7
    %vm74 = vcmp.lt.s32.totalorder %v73, 7
    %75 = vst.msk [vmem:[#allocation1] sm:$0xff] %vm74, %v71
    %s76 = scalar_lea.vmem [#allocation1], 8
    %s77 = scalar_lea.vmem [#allocation0], 16
    %s78 = scalar_lea.vmem %s77, 7 [#allocation0]
    %v79 = vld [vmem:[%s78] ss:$-1 sm:$0xff]
    %v80 = vrot.slane %v79, 1
    %81 = vst [vmem:[%s76] sm:$0xff] %v80
    %s82 = scalar_lea.vmem %s77, 8 [#allocation0]
    %s83 = scalar_lea.vmem %s82, 7 [#allocation0]
    %v84 = vld [vmem:[%s83] ss:$-1 sm:$0xff]
    %v85 = vrot.slane %v84, 1
    %v86 = vlaneseq
    %v87 = vshrl.u32 %v86, 7
    %vm88 = vcmp.lt.s32.totalorder %v87, 7
    %89 = vst.msk [vmem:[%s76] sm:$0xff] %vm88, %v85
    %s90 = scalar_lea.vmem [#allocation1], 16
    %s91 = scalar_lea.vmem [#allocation0], 32
    %s92 = scalar_lea.vmem %s91, 7 [#allocation0]
    %v93 = vld [vmem:[%s92] ss:$-1 sm:$0xff]
    %v94 = vrot.slane %v93, 1
    %95 = vst [vmem:[%s90] sm:$0xff] %v94
    %s96 = scalar_lea.vmem %s91, 8 [#allocation0]
    %s97 = scalar_lea.vmem %s96, 7 [#allocation0]
    %v98 = vld [vmem:[%s97] ss:$-1 sm:$0xff]
    %v99 = vrot.slane %v98, 1
    %v100 = vlaneseq
    %v101 = vshrl.u32 %v100, 7
    %vm102 = vcmp.lt.s32.totalorder %v101, 7
    %103 = vst.msk [vmem:[%s90] sm:$0xff] %vm102, %v99
    %s104 = scalar_lea.vmem [#allocation1], 24
    %s105 = scalar_lea.vmem [#allocation0], 48
    %s106 = scalar_lea.vmem %s105, 7 [#allocation0]
    %v107 = vld [vmem:[%s106] ss:$-1 sm:$0xff]
    %v108 = vrot.slane %v107, 1
    %109 = vst [vmem:[%s104] sm:$0xff] %v108
    %s110 = scalar_lea.vmem %s105, 8 [#allocation0]
    %s111 = scalar_lea.vmem %s110, 7 [#allocation0]
    %v112 = vld [vmem:[%s111] ss:$-1 sm:$0xff]
    %v113 = vrot.slane %v112, 1
    %v114 = vlaneseq
    %v115 = vshrl.u32 %v114, 7
    %vm116 = vcmp.lt.s32.totalorder %v115, 7
    %117 = vst.msk [vmem:[%s104] sm:$0xff] %vm116, %v113
    %s118 = scalar_lea.vmem [#allocation1], 32
    %s119 = scalar_lea.vmem [#allocation0], 64
    %s120 = scalar_lea.vmem %s119, 7 [#allocation0]
    %v121 = vld [vmem:[%s120] ss:$-1 sm:$0xff]
    %v122 = vrot.slane %v121, 1
    %123 = vst [vmem:[%s118] sm:$0xff] %v122
    %s124 = scalar_lea.vmem %s119, 8 [#allocation0]
    %s125 = scalar_lea.vmem %s124, 7 [#allocation0]
    %v126 = vld [vmem:[%s125] ss:$-1 sm:$0xff]
    %v127 = vrot.slane %v126, 1
    %v128 = vlaneseq
    %v129 = vshrl.u32 %v128, 7
    %vm130 = vcmp.lt.s32.totalorder %v129, 7
    %131 = vst.msk [vmem:[%s118] sm:$0xff] %vm130, %v127
    %s132 = scalar_lea.vmem [#allocation1], 40
    %s133 = scalar_lea.vmem [#allocation0], 80
    %s134 = scalar_lea.vmem %s133, 7 [#allocation0]
    %v135 = vld [vmem:[%s134] ss:$-1 sm:$0xff]
    %v136 = vrot.slane %v135, 1
    %137 = vst [vmem:[%s132] sm:$0xff] %v136
    %s138 = scalar_lea.vmem %s133, 8 [#allocation0]
    %s139 = scalar_lea.vmem %s138, 7 [#allocation0]
    %v140 = vld [vmem:[%s139] ss:$-1 sm:$0xff]
    %v141 = vrot.slane %v140, 1
    %v142 = vlaneseq
    %v143 = vshrl.u32 %v142, 7
    %vm144 = vcmp.lt.s32.totalorder %v143, 7
    %145 = vst.msk [vmem:[%s132] sm:$0xff] %vm144, %v141
    %s146 = scalar_lea.vmem [#allocation1], 48
    %s147 = scalar_lea.vmem [#allocation0], 96
    %s148 = scalar_lea.vmem %s147, 7 [#allocation0]
    %v149 = vld [vmem:[%s148] ss:$-1 sm:$0xff]
    %v150 = vrot.slane %v149, 1
    %151 = vst [vmem:[%s146] sm:$0xff] %v150
    %s152 = scalar_lea.vmem %s147, 8 [#allocation0]
    %s153 = scalar_lea.vmem %s152, 7 [#allocation0]
    %v154 = vld [vmem:[%s153] ss:$-1 sm:$0xff]
    %v155 = vrot.slane %v154, 1
    %v156 = vlaneseq
    %v157 = vshrl.u32 %v156, 7
    %vm158 = vcmp.lt.s32.totalorder %v157, 7
    %159 = vst.msk [vmem:[%s146] sm:$0xff] %vm158, %v155
    %s160 = scalar_lea.vmem [#allocation1], 56
    %s161 = scalar_lea.vmem [#allocation0], 112
    %s162 = scalar_lea.vmem %s161, 7 [#allocation0]
    %v163 = vld [vmem:[%s162] ss:$-1 sm:$0xff]
    %v164 = vrot.slane %v163, 1
    %165 = vst [vmem:[%s160] sm:$0xff] %v164
    %s166 = scalar_lea.vmem %s161, 8 [#allocation0]
    %s167 = scalar_lea.vmem %s166, 7 [#allocation0]
    %v168 = vld [vmem:[%s167] ss:$-1 sm:$0xff]
    %v169 = vrot.slane %v168, 1
    %v170 = vlaneseq
    %v171 = vshrl.u32 %v170, 7
    %vm172 = vcmp.lt.s32.totalorder %v171, 7
    %173 = vst.msk [vmem:[%s160] sm:$0xff] %vm172, %v169
    // Predicated region
    $region36: #{reverse.0} parent=1 // pred_check
      _
    $region37: #{reverse.0} parent=1 // pred_check_branch
      %175 = sbr.rel (0) target = $region39
    $region38: #{reverse.0} parent=1 // pred_region
      // Predicated region
      $region40: #{reverse.0} parent=38 // pred_check
        _
      $region41: #{reverse.0} parent=38 // pred_check_branch
        %177 = sbr.rel (0) target = $region43
      $region42: #{reverse.0} parent=38 // pred_region
        // Predicated region
        $region55: #{reverse.0} parent=42 // pred_check
          _
        $region56: #{reverse.0} parent=42 // pred_check_branch
          %207 = sbr.rel (0) target = $region58
        $region57: #{reverse.0} parent=42 // pred_region
          loop: start=0, step=1, limit=1
          $region59: #{reverse.0} parent=57 // loop_pre_header
            _
          $region60: #{reverse.0} parent=57 // loop_header
            %s209 = sphi 0, %s213
            %p210 = scmp.ge.s32.totalorder %s209, 1
            %s214 = sphi [#allocation1], [#allocation1]
            %s215 = sphi %s1, %s1
          $region61: #{reverse.0} parent=57 // loop_header_branch
            %212 = sbr.rel (%p210) target = $region65
          $region62: #{reverse.0} parent=57 // loop_body
            %v216 = vld [vmem:[%s214] sm:$0xff]
            %217 = vst [vmem:[%s215] sm:$0xff] %v216
            %v218 = vld [vmem:[%s214 + $0x8] sm:$0xff]
            %219 = vst [vmem:[%s215 + $0x8] sm:$0xff] %v218
            %v220 = vld [vmem:[%s214 + $0x10] sm:$0xff]
            %221 = vst [vmem:[%s215 + $0x10] sm:$0xff] %v220
            %v222 = vld [vmem:[%s214 + $0x18] sm:$0xff]
            %223 = vst [vmem:[%s215 + $0x18] sm:$0xff] %v222
            %v224 = vld [vmem:[%s214 + $0x20] sm:$0xff]
            %225 = vst [vmem:[%s215 + $0x20] sm:$0xff] %v224
            %v226 = vld [vmem:[%s214 + $0x28] sm:$0xff]
            %227 = vst [vmem:[%s215 + $0x28] sm:$0xff] %v226
            %v228 = vld [vmem:[%s214 + $0x30] sm:$0xff]
            %229 = vst [vmem:[%s215 + $0x30] sm:$0xff] %v228
            %v230 = vld [vmem:[%s214 + $0x38] sm:$0xff]
            %231 = vst [vmem:[%s215 + $0x38] sm:$0xff] %v230
          $region63: #{reverse.0} parent=57 // loop_footer
            %s213 = sadd.s32 1, %s209
          $region64: #{reverse.0} parent=57 // loop_footer_branch
            %208 = sbr.rel target = $region60
          $region65: #{reverse.0} parent=57 // loop_exit
            _
        $region58: #{reverse.0} parent=42 // pred_fallthru
          _
        // Predicated region
        $region66: #{reverse.0} parent=42 // pred_check
          _
        $region67: #{reverse.0} parent=42 // pred_check_branch
          %233 = sbr.rel target = $region69
        $region68: #{reverse.0} parent=42 // pred_region
          _
        $region69: #{reverse.0} parent=42 // pred_fallthru
          _
      $region43: #{reverse.0} parent=38 // pred_fallthru
        _
      // Predicated region
      $region44: #{reverse.0} parent=38 // pred_check
        _
      $region45: #{reverse.0} parent=38 // pred_check_branch
        %179 = sbr.rel target = $region47
      $region46: #{reverse.0} parent=38 // pred_region
        %s181 = ssub.s32 256, 1
        loop: start=0, step=1, limit=1
        $region48: #{reverse.0} parent=46 // loop_pre_header
          _
        $region49: #{reverse.0} parent=46 // loop_header
          %s183 = sphi 0, %s187
          %p184 = scmp.ge.s32.totalorder %s183, 1
          %s188 = sphi [#allocation1], [#allocation1]
          %s189 = sphi %s1, %s1
        $region50: #{reverse.0} parent=46 // loop_header_branch
          %186 = sbr.rel (%p184) target = $region54
        $region51: #{reverse.0} parent=46 // loop_body
          %v190 = vld [vmem:[%s188] sm:%s181]
          %191 = vst [vmem:[%s189] sm:%s181] %v190
          %v192 = vld [vmem:[%s188 + $0x8] sm:%s181]
          %193 = vst [vmem:[%s189 + $0x8] sm:%s181] %v192
          %v194 = vld [vmem:[%s188 + $0x10] sm:%s181]
          %195 = vst [vmem:[%s189 + $0x10] sm:%s181] %v194
          %v196 = vld [vmem:[%s188 + $0x18] sm:%s181]
          %197 = vst [vmem:[%s189 + $0x18] sm:%s181] %v196
          %v198 = vld [vmem:[%s188 + $0x20] sm:%s181]
          %199 = vst [vmem:[%s189 + $0x20] sm:%s181] %v198
          %v200 = vld [vmem:[%s188 + $0x28] sm:%s181]
          %201 = vst [vmem:[%s189 + $0x28] sm:%s181] %v200
          %v202 = vld [vmem:[%s188 + $0x30] sm:%s181]
          %203 = vst [vmem:[%s189 + $0x30] sm:%s181] %v202
          %v204 = vld [vmem:[%s188 + $0x38] sm:%s181]
          %205 = vst [vmem:[%s189 + $0x38] sm:%s181] %v204
        $region52: #{reverse.0} parent=46 // loop_footer
          %s187 = sadd.s32 1, %s183
        $region53: #{reverse.0} parent=46 // loop_footer_branch
          %182 = sbr.rel target = $region49
        $region54: #{reverse.0} parent=46 // loop_exit
          _
      $region47: #{reverse.0} parent=38 // pred_fallthru
        _
    $region39: #{reverse.0} parent=1 // pred_fallthru
      _
    %234 = vnop

// kernel: spectral_transform.4
$region0: #{spectral_transform.4}
  #allocation0 [shape = 'u32[]', space=smem, size = 0x4, offset = 0x4, fixed_abs, tag = 'smem constant byte address 0x4 - core index']
  #allocation1 [shape = 'u32[144,128]{1,0:T(1,128)}', space=vmem, size = 0x12000, scoped, tag = 'internal scratch']
  %s0 = inlined_call_operand.vmem [shape: f32[2,4,144], index: 0, kind: input, shape index: {}]
  %s1 = inlined_call_operand.vmem [shape: f32[2,4,144], index: 1, kind: input, shape index: {}]
  %s2 = inlined_call_operand.vmem [shape: f32[8,4], index: 2, kind: input, shape index: {}]
  %s3 = inlined_call_operand.vmem [shape: f32[8,4], index: 3, kind: input, shape index: {}]
  %s4 = inlined_call_operand.vmem [shape: f32[8,1], index: 4, kind: input, shape index: {}]
  %s5 = inlined_call_operand.vmem [shape: f32[2,4,144], index: 5, kind: output, shape index: {0}]
  %s6 = inlined_call_operand.vmem [shape: f32[2,4,144], index: 6, kind: output, shape index: {1}]
  %7 = xla_tuple %s5, %s6
  %s8 = sld [smem:[#allocation0]]
  $region61: #{spectral_transform.4} parent=0
    _
  %s10 = ssub.s32 1, %s8
  %s11 = scalar_select 0, %s10, %s8
  loop: start=0, step=1, limit=4
  $region2: #{spectral_transform.4} parent=0 // loop_pre_header
    _
  $region3: #{spectral_transform.4} parent=0 // loop_header
    %s13 = sphi 0, %s17
    %p14 = scmp.ge.s32.totalorder %s13, 4
    %s20 = sphi 0, %s32
    %s21 = sphi 0, %s28
    %s22 = sphi 0, %s20
    %s23 = sphi 0, %s21
    %s24 = sphi 0, %s22
    %s25 = sphi 0, %s23
    %s37 = sphi 0, %s39
    %s40 = sphi 0, %s37
    %s41 = sphi 0, %s40
    %s57 = sphi 0, %s41
    %s65 = sphi 0, %s67
    %s68 = sphi 0, %s65
    %s69 = sphi 0, %s68
    %s85 = sphi 0, %s69
    %s89 = sphi 0, %s89
    %s91 = sphi 0, %s89
    %s92 = sphi 0, %s91
    %s106 = sphi 0, %s92
    %s110 = sphi 0, %s110
    %s112 = sphi 0, %s110
    %s113 = sphi 0, %s112
    %s127 = sphi 0, %s113
    %s131 = sphi 0, %s131
    %s133 = sphi 0, %s131
    %s134 = sphi 0, %s133
    %s148 = sphi 0, %s134
    %s156 = sphi 0, %s158
    %s159 = sphi 0, %s156
    %s160 = sphi 0, %s159
    %s176 = sphi 0, %s160
    %s184 = sphi 0, %s186
    %s187 = sphi 0, %s184
    %s188 = sphi 0, %s187
    %s204 = sphi 0, %s188
  $region4: #{spectral_transform.4} parent=0 // loop_header_branch
    %16 = sbr.rel (%p14) target = $region8
  $region5: #{spectral_transform.4} parent=0 // loop_body
    %s18 = ssub.s32 %s13, 1
    %s19 = ssub.s32 %s13, 2
    %s26 = sadd.s32 1, %s21
    %p27 = scmp.ge.s32.totalorder %s26, 1
    %s28 = scalar_select %p27, 0, %s26
    %s29 = sadd.s32 1, %s20
    %s30 = scalar_select %p27, %s29, %s20
    %p31 = scmp.ge.s32.totalorder %s30, 2
    %s32 = scalar_select %p31, 0, %s30
    %s33 = ssub.s32 %s20, %s32
    %s34 = ssub.s32 %s21, %s28
    %s35 = sor.u32 %s33, %s34
    %p36 = scmp.eq.s32.totalorder %s35, 0
    %s38 = sadd.s32 %s37, 1
    %s39 = scalar_select %p36, %s37, %s38
    %p42 = pneg %p36
    %p43 = scmp.eq.s32.totalorder %s13, 1
    %p44 = por %p42, %p43
    %p45 = scmp.ne.s32.totalorder %s37, %s40
    %p46 = scmp.eq.s32.totalorder %s13, 0
    %p47 = por %p45, %p46
    %p48 = scmp.ne.s32.totalorder %s37, %s40
    %p49 = scmp.eq.s32.totalorder %s18, 1
    %p50 = por %p48, %p49
    %p51 = scmp.ne.s32.totalorder %s40, %s41
    %p52 = scmp.eq.s32.totalorder %s18, 0
    %p53 = por %p51, %p52
    %p54 = scmp.ne.s32.totalorder %s40, %s41
    %p55 = scmp.eq.s32.totalorder %s19, 1
    %p56 = por %p54, %p55
    %p58 = scmp.ne.s32.totalorder %s41, %s57
    %p59 = scmp.eq.s32.totalorder %s19, 0
    %p60 = por %p58, %p59
    %s61 = ssub.s32 %s20, %s32
    %s62 = ssub.s32 %s21, %s28
    %s63 = sor.u32 %s61, %s62
    %p64 = scmp.eq.s32.totalorder %s63, 0
    %s66 = sadd.s32 %s65, 1
    %s67 = scalar_select %p64, %s65, %s66
    %p70 = pneg %p64
    %p71 = scmp.eq.s32.totalorder %s13, 1
    %p72 = por %p70, %p71
    %p73 = scmp.ne.s32.totalorder %s65, %s68
    %p74 = scmp.eq.s32.totalorder %s13, 0
    %p75 = por %p73, %p74
    %p76 = scmp.ne.s32.totalorder %s65, %s68
    %p77 = scmp.eq.s32.totalorder %s18, 1
    %p78 = por %p76, %p77
    %p79 = scmp.ne.s32.totalorder %s68, %s69
    %p80 = scmp.eq.s32.totalorder %s18, 0
    %p81 = por %p79, %p80
    %p82 = scmp.ne.s32.totalorder %s68, %s69
    %p83 = scmp.eq.s32.totalorder %s19, 1
    %p84 = por %p82, %p83
    %p86 = scmp.ne.s32.totalorder %s69, %s85
    %p87 = scmp.eq.s32.totalorder %s19, 0
    %p88 = por %p86, %p87
    %s90 = sadd.s32 %s89, 1
    %p93 = scmp.eq.s32.totalorder %s13, 1
    %p94 = scmp.ne.s32.totalorder %s89, %s91
    %p95 = scmp.eq.s32.totalorder %s13, 0
    %p96 = por %p94, %p95
    %p97 = scmp.ne.s32.totalorder %s89, %s91
    %p98 = scmp.eq.s32.totalorder %s18, 1
    %p99 = por %p97, %p98
    %p100 = scmp.ne.s32.totalorder %s91, %s92
    %p101 = scmp.eq.s32.totalorder %s18, 0
    %p102 = por %p100, %p101
    %p103 = scmp.ne.s32.totalorder %s91, %s92
    %p104 = scmp.eq.s32.totalorder %s19, 1
    %p105 = por %p103, %p104
    %p107 = scmp.ne.s32.totalorder %s92, %s106
    %p108 = scmp.eq.s32.totalorder %s19, 0
    %p109 = por %p107, %p108
    %s111 = sadd.s32 %s110, 1
    %p114 = scmp.eq.s32.totalorder %s13, 1
    %p115 = scmp.ne.s32.totalorder %s110, %s112
    %p116 = scmp.eq.s32.totalorder %s13, 0
    %p117 = por %p115, %p116
    %p118 = scmp.ne.s32.totalorder %s110, %s112
    %p119 = scmp.eq.s32.totalorder %s18, 1
    %p120 = por %p118, %p119
    %p121 = scmp.ne.s32.totalorder %s112, %s113
    %p122 = scmp.eq.s32.totalorder %s18, 0
    %p123 = por %p121, %p122
    %p124 = scmp.ne.s32.totalorder %s112, %s113
    %p125 = scmp.eq.s32.totalorder %s19, 1
    %p126 = por %p124, %p125
    %p128 = scmp.ne.s32.totalorder %s113, %s127
    %p129 = scmp.eq.s32.totalorder %s19, 0
    %p130 = por %p128, %p129
    %s132 = sadd.s32 %s131, 1
    %p135 = scmp.eq.s32.totalorder %s13, 1
    %p136 = scmp.ne.s32.totalorder %s131, %s133
    %p137 = scmp.eq.s32.totalorder %s13, 0
    %p138 = por %p136, %p137
    %p139 = scmp.ne.s32.totalorder %s131, %s133
    %p140 = scmp.eq.s32.totalorder %s18, 1
    %p141 = por %p139, %p140
    %p142 = scmp.ne.s32.totalorder %s133, %s134
    %p143 = scmp.eq.s32.totalorder %s18, 0
    %p144 = por %p142, %p143
    %p145 = scmp.ne.s32.totalorder %s133, %s134
    %p146 = scmp.eq.s32.totalorder %s19, 1
    %p147 = por %p145, %p146
    %p149 = scmp.ne.s32.totalorder %s134, %s148
    %p150 = scmp.eq.s32.totalorder %s19, 0
    %p151 = por %p149, %p150
    %s152 = ssub.s32 %s20, %s32
    %s153 = ssub.s32 %s21, %s28
    %s154 = sor.u32 %s152, %s153
    %p155 = scmp.eq.s32.totalorder %s154, 0
    %s157 = sadd.s32 %s156, 1
    %s158 = scalar_select %p155, %s156, %s157
    %p161 = pneg %p155
    %p162 = scmp.eq.s32.totalorder %s13, 1
    %p163 = por %p161, %p162
    %p164 = scmp.ne.s32.totalorder %s156, %s159
    %p165 = scmp.eq.s32.totalorder %s13, 0
    %p166 = por %p164, %p165
    %p167 = scmp.ne.s32.totalorder %s156, %s159
    %p168 = scmp.eq.s32.totalorder %s18, 1
    %p169 = por %p167, %p168
    %p170 = scmp.ne.s32.totalorder %s159, %s160
    %p171 = scmp.eq.s32.totalorder %s18, 0
    %p172 = por %p170, %p171
    %p173 = scmp.ne.s32.totalorder %s159, %s160
    %p174 = scmp.eq.s32.totalorder %s19, 1
    %p175 = por %p173, %p174
    %p177 = scmp.ne.s32.totalorder %s160, %s176
    %p178 = scmp.eq.s32.totalorder %s19, 0
    %p179 = por %p177, %p178
    %s180 = ssub.s32 %s20, %s32
    %s181 = ssub.s32 %s21, %s28
    %s182 = sor.u32 %s180, %s181
    %p183 = scmp.eq.s32.totalorder %s182, 0
    %s185 = sadd.s32 %s184, 1
    %s186 = scalar_select %p183, %s184, %s185
    %p189 = pneg %p183
    %p190 = scmp.eq.s32.totalorder %s13, 1
    %p191 = por %p189, %p190
    %p192 = scmp.ne.s32.totalorder %s184, %s187
    %p193 = scmp.eq.s32.totalorder %s13, 0
    %p194 = por %p192, %p193
    %p195 = scmp.ne.s32.totalorder %s184, %s187
    %p196 = scmp.eq.s32.totalorder %s18, 1
    %p197 = por %p195, %p196
    %p198 = scmp.ne.s32.totalorder %s187, %s188
    %p199 = scmp.eq.s32.totalorder %s18, 0
    %p200 = por %p198, %p199
    %p201 = scmp.ne.s32.totalorder %s187, %s188
    %p202 = scmp.eq.s32.totalorder %s19, 1
    %p203 = por %p201, %p202
    %p205 = scmp.ne.s32.totalorder %s188, %s204
    %p206 = scmp.eq.s32.totalorder %s19, 0
    %p207 = por %p205, %p206
    %p208 = scmp.le.s32.totalorder 1, %s13
    %p209 = scmp.lt.s32.totalorder %s13, 3
    %p210 = pnand %p208, %p209
    %p211 = pneg %p210
    // Predicated region
    $region9: #{spectral_transform.4} parent=5 // pred_check
      _
    $region10: #{spectral_transform.4} parent=5 // pred_check_branch
      %213 = sbr.rel (%p210) target = $region12
    $region11: #{spectral_transform.4} parent=5 // pred_region
      %s214 = ssub.s32 %s13, 1
      // Predicated region
      $region13: #{spectral_transform.4} parent=11 // pred_check
        %p215 = pneg %p102
      $region14: #{spectral_transform.4} parent=11 // pred_check_branch
        %217 = sbr.rel (%p215) target = $region16
      $region15: #{spectral_transform.4} parent=11 // pred_region
        _
      $region16: #{spectral_transform.4} parent=11 // pred_fallthru
        _
      // Predicated region
      $region17: #{spectral_transform.4} parent=11 // pred_check
        %p218 = pneg %p123
      $region18: #{spectral_transform.4} parent=11 // pred_check_branch
        %220 = sbr.rel (%p218) target = $region20
      $region19: #{spectral_transform.4} parent=11 // pred_region
        _
      $region20: #{spectral_transform.4} parent=11 // pred_fallthru
        _
      // Predicated region
      $region21: #{spectral_transform.4} parent=11 // pred_check
        %p221 = pneg %p144
      $region22: #{spectral_transform.4} parent=11 // pred_check_branch
        %223 = sbr.rel (%p221) target = $region24
      $region23: #{spectral_transform.4} parent=11 // pred_region
        _
      $region24: #{spectral_transform.4} parent=11 // pred_fallthru
        _
    $region12: #{spectral_transform.4} parent=5 // pred_fallthru
      _
    %p224 = scmp.lt.s32.totalorder %s13, 2
    // Predicated region
    $region25: #{spectral_transform.4} parent=5 // pred_check
      %p225 = pneg %p224
    $region26: #{spectral_transform.4} parent=5 // pred_check_branch
      %227 = sbr.rel (%p225) target = $region28
    $region27: #{spectral_transform.4} parent=5 // pred_region
      // Predicated region
      $region29: #{spectral_transform.4} parent=27 // pred_check
        %p228 = pneg %p47
      $region30: #{spectral_transform.4} parent=27 // pred_check_branch
        %230 = sbr.rel (%p228) target = $region32
      $region31: #{spectral_transform.4} parent=27 // pred_region
        %s231 = smul.u32 2, %s21
        %p232 = scmp.lt.s32.totalorder %s20, 1
        %s233 = scalar_select %p232, %s20, 1
        %p234 = scmp.lt.s32.totalorder %s231, 1
        %s235 = scalar_select %p234, %s231, 1
        %s236 = smul.addr %s233, 2
        %s237 = sadd.s32 %s235, %s236
        %s238 = smul.addr %s237, 4
        %s239 = scalar_lea.vmem %s0, %s238
        %s240 = smul.u32 2, %s21
      $region32: #{spectral_transform.4} parent=27 // pred_fallthru
        _
      // Predicated region
      $region33: #{spectral_transform.4} parent=27 // pred_check
        %p241 = pneg %p75
      $region34: #{spectral_transform.4} parent=27 // pred_check_branch
        %243 = sbr.rel (%p241) target = $region36
      $region35: #{spectral_transform.4} parent=27 // pred_region
        %s244 = smul.u32 2, %s21
        %p245 = scmp.lt.s32.totalorder %s20, 1
        %s246 = scalar_select %p245, %s20, 1
        %p247 = scmp.lt.s32.totalorder %s244, 1
        %s248 = scalar_select %p247, %s244, 1
        %s249 = smul.addr %s246, 2
        %s250 = sadd.s32 %s248, %s249
        %s251 = smul.addr %s250, 4
        %s252 = scalar_lea.vmem %s1, %s251
        %s253 = smul.u32 2, %s21
      $region36: #{spectral_transform.4} parent=27 // pred_fallthru
        _
    $region28: #{spectral_transform.4} parent=5 // pred_fallthru
      _
    %p254 = scmp.le.s32.totalorder 1, %s13
    %p255 = scmp.lt.s32.totalorder %s13, 3
    %p256 = pnand %p254, %p255
    %p257 = pneg %p256
    // Predicated region
    $region37: #{spectral_transform.4} parent=5 // pred_check
      _
    $region38: #{spectral_transform.4} parent=5 // pred_check_branch
      %259 = sbr.rel (%p256) target = $region40
    $region39: #{spectral_transform.4} parent=5 // pred_region
      %s260 = ssub.s32 %s13, 1
      %s261 = smul.u32 2, %s23
      %p262 = scmp.lt.s32.totalorder %s22, 1
      %s263 = scalar_select %p262, %s22, 1
      %p264 = scmp.lt.s32.totalorder %s261, 1
      %s265 = scalar_select %p264, %s261, 1
      %s266 = smul.addr %s263, 2
      %s267 = sadd.s32 %s265, %s266
      %s268 = smul.addr %s267, 4
      %s269 = scalar_lea.vmem %s0, %s268
      %p270 = pneg %p53
      %p271 = pneg %p50
      %s272 = smul.u32 2, %s23
      %p273 = scmp.lt.s32.totalorder %s22, 1
      %s274 = scalar_select %p273, %s22, 1
      %p275 = scmp.lt.s32.totalorder %s272, 1
      %s276 = scalar_select %p275, %s272, 1
      %s277 = smul.addr %s274, 2
      %s278 = sadd.s32 %s276, %s277
      %s279 = smul.addr %s278, 4
      %s280 = scalar_lea.vmem %s1, %s279
      %p281 = pneg %p81
      %p282 = pneg %p78
      %p283 = pneg %p102
      %p284 = pneg %p99
      %p285 = pneg %p123
      %p286 = pneg %p120
      %p287 = pneg %p144
      %p288 = pneg %p141
      %p289 = pneg %p172
      %p290 = pneg %p169
      %s291 = smul.u32 2, %s23
      %p292 = scmp.lt.s32.totalorder %s22, 1
      %s293 = scalar_select %p292, %s22, 1
      %p294 = scmp.lt.s32.totalorder %s291, 1
      %s295 = scalar_select %p294, %s291, 1
      %s296 = smul.addr %s293, 2
      %s297 = sadd.s32 %s295, %s296
      %s298 = smul.addr %s297, 4
      %s299 = scalar_lea.vmem %s5, %s298
      %p300 = pneg %p200
      %p301 = pneg %p197
      %s302 = smul.u32 2, %s23
      %p303 = scmp.lt.s32.totalorder %s22, 1
      %s304 = scalar_select %p303, %s22, 1
      %p305 = scmp.lt.s32.totalorder %s302, 1
      %s306 = scalar_select %p305, %s302, 1
      %s307 = smul.addr %s304, 2
      %s308 = sadd.s32 %s306, %s307
      %s309 = smul.addr %s308, 4
      %s310 = scalar_lea.vmem %s6, %s309
      %s311 = smul.u32 2, %s23
      %p312 = scmp.lt.s32.totalorder %s22, 1
      %s313 = scalar_select %p312, %s22, 1
      %p314 = scmp.lt.s32.totalorder %s311, 1
      %s315 = scalar_select %p314, %s311, 1
      %s316 = smul.addr %s313, 2
      %s317 = sadd.s32 %s315, %s316
      %s318 = smul.addr %s317, 4
      %s319 = scalar_lea.vmem %s0, %s318
      %s320 = smul.u32 2, %s23
      %s321 = smul.u32 2, %s23
      %p322 = scmp.lt.s32.totalorder %s22, 1
      %s323 = scalar_select %p322, %s22, 1
      %p324 = scmp.lt.s32.totalorder %s321, 1
      %s325 = scalar_select %p324, %s321, 1
      %s326 = smul.addr %s323, 2
      %s327 = sadd.s32 %s325, %s326
      %s328 = smul.addr %s327, 4
      %s329 = scalar_lea.vmem %s1, %s328
      %s330 = smul.u32 2, %s23
      %s331 = smul.u32 2, %s23
      %p332 = scmp.lt.s32.totalorder %s22, 1
      %s333 = scalar_select %p332, %s22, 1
      %p334 = scmp.lt.s32.totalorder %s331, 1
      %s335 = scalar_select %p334, %s331, 1
      %s336 = smul.addr %s333, 2
      %s337 = sadd.s32 %s335, %s336
      %s338 = smul.addr %s337, 4
      %s339 = scalar_lea.vmem %s5, %s338
      %s340 = smul.u32 2, %s23
      %s341 = smul.u32 2, %s23
      %p342 = scmp.lt.s32.totalorder %s22, 1
      %s343 = scalar_select %p342, %s22, 1
      %p344 = scmp.lt.s32.totalorder %s341, 1
      %s345 = scalar_select %p344, %s341, 1
      %s346 = smul.addr %s343, 2
      %s347 = sadd.s32 %s345, %s346
      %s348 = smul.addr %s347, 4
      %s349 = scalar_lea.vmem %s6, %s348
      %s350 = smul.u32 2, %s23
      %v351 = vld [vmem:[%s2] sm:$0xff]
      %v352 = vld [vmem:[%s319] sm:$0xff]
      %v353 = vld [vmem:[%s3] sm:$0xff]
      %v354 = vld [vmem:[%s329] sm:$0xff]
      %v356 = vcombine.high %v354, %v354
      %vm357 = vcmask 31744
      %v359 = vsel %vm357, %v353, 0
      %vm361 = vcmask 1043456
      %v362 = vsel %vm361, %v354, 0
      %v364 = vsel %vm361, %v356, 0
      %366 = vmatprep.subr.mxu0 0.0
      %367 = vmatpush1.msra.mxu0 0.0
      %368 = vmatprep.subr.mxu0 0.0
      %369 = vmatpush1.msra.mxu0 0.0
      %370 = vmatprep.subr.mxu0 0.0
      %371 = vmatpush1.msra.mxu0 0.0
      %372 = vmatprep.subr.mxu0 0.0
      %373 = vmatpush1.msra.mxu0 0.0
      %374 = vmatprep.subr.mxu0 0.0
      %375 = vmatpush1.msra.mxu0 0.0
      %376 = vmatprep.subr.mxu0 0.0
      %377 = vmatpush1.msra.mxu0 0.0
      %378 = vmatprep.subr.mxu0 0.0
      %379 = vmatpush1.msra.mxu0 0.0
      %380 = vmatprep.subr.mxu0 0.0
      %381 = vmatpush1.msra.mxu0 0.0
      %382 = vmatprep.subr.mxu0 0.0
      %383 = vmatpush1.msra.mxu0 0.0
      %384 = vmatprep.subr.mxu0 0.0
      %385 = vmatpush1.msra.mxu0 0.0
      %386 = vmatprep.subr.mxu0 0.0
      %387 = vmatpush1.msra.mxu0 0.0
      %388 = vmatprep.subr.mxu0 0.0
      %389 = vmatpush1.msra.mxu0 0.0
      %390 = vmatprep.subr.mxu0 0.0
      %391 = vmatpush1.msra.mxu0 0.0
      %392 = vmatprep.subr.mxu0 0.0
      %393 = vmatpush1.msra.mxu0 0.0
      %394 = vmatprep.subr.mxu0 0.0
      %395 = vmatpush1.msra.mxu0 0.0
      %396 = vmatprep.subr.mxu0 %v364
      %397 = vmatpush1.msra.mxu0 %v362
      %398 = vmatprep.subr.mxu0 0.0
      %399 = vmatpush2.msra.mxu0 0.0
      %400 = vmatprep.subr.mxu0 0.0
      %401 = vmatpush2.msra.mxu0 0.0
      %402 = vmatprep.subr.mxu0 0.0
      %403 = vmatpush2.msra.mxu0 0.0
      %404 = vmatprep.subr.mxu0 0.0
      %405 = vmatpush2.msra.mxu0 0.0
      %406 = vmatprep.subr.mxu0 0.0
      %407 = vmatpush2.msra.mxu0 0.0
      %408 = vmatprep.subr.mxu0 0.0
      %409 = vmatpush2.msra.mxu0 0.0
      %410 = vmatprep.subr.mxu0 0.0
      %411 = vmatpush2.msra.mxu0 0.0
      %412 = vmatprep.subr.mxu0 0.0
      %413 = vmatpush2.msra.mxu0 0.0
      %414 = vmatprep.subr.mxu0 0.0
      %415 = vmatpush2.msra.mxu0 0.0
      %416 = vmatprep.subr.mxu0 0.0
      %417 = vmatpush2.msra.mxu0 0.0
      %418 = vmatprep.subr.mxu0 0.0
      %419 = vmatpush2.msra.mxu0 0.0
      %420 = vmatprep.subr.mxu0 0.0
      %421 = vmatpush2.msra.mxu0 0.0
      %422 = vmatprep.subr.mxu0 0.0
      %423 = vmatpush2.msra.mxu0 0.0
      %424 = vmatprep.subr.mxu0 0.0
      %425 = vmatpush2.msra.mxu0 0.0
      %426 = vmatprep.subr.mxu0 0.0
      %427 = vmatpush2.msra.mxu0 0.0
      %428 = vmatprep.subr.mxu0 0.0
      %429 = vmatpush2.msra.mxu0 0.0
      %430 = vmatprep.mubr.f32.mxu0 0.0
      %431 = vmatmul.mubr.f32.gmra.mxu0 %v359
      %v432 = vpop.f32.mrf.mxu0
      %v433 = vadd.f32 0.0, %v432
      %v434 = vpop.f32.mrf.mxu0
      %v435 = vadd.f32 0.0, %v434
      %436 = vdwg.mxu0
      %v438 = vcombine.high %v352, %v352
      %v440 = vsel %vm357, %v351, 0
      %v442 = vsel %vm361, %v352, 0
      %v444 = vsel %vm361, %v438, 0
      %446 = vmatprep.subr.mxu0 0.0
      %447 = vmatpush1.msra.mxu0 0.0
      %448 = vmatprep.subr.mxu0 0.0
      %449 = vmatpush1.msra.mxu0 0.0
      %450 = vmatprep.subr.mxu0 0.0
      %451 = vmatpush1.msra.mxu0 0.0
      %452 = vmatprep.subr.mxu0 0.0
      %453 = vmatpush1.msra.mxu0 0.0
      %454 = vmatprep.subr.mxu0 0.0
      %455 = vmatpush1.msra.mxu0 0.0
      %456 = vmatprep.subr.mxu0 0.0
      %457 = vmatpush1.msra.mxu0 0.0
      %458 = vmatprep.subr.mxu0 0.0
      %459 = vmatpush1.msra.mxu0 0.0
      %460 = vmatprep.subr.mxu0 0.0
      %461 = vmatpush1.msra.mxu0 0.0
      %462 = vmatprep.subr.mxu0 0.0
      %463 = vmatpush1.msra.mxu0 0.0
      %464 = vmatprep.subr.mxu0 0.0
      %465 = vmatpush1.msra.mxu0 0.0
      %466 = vmatprep.subr.mxu0 0.0
      %467 = vmatpush1.msra.mxu0 0.0
      %468 = vmatprep.subr.mxu0 0.0
      %469 = vmatpush1.msra.mxu0 0.0
      %470 = vmatprep.subr.mxu0 0.0
      %471 = vmatpush1.msra.mxu0 0.0
      %472 = vmatprep.subr.mxu0 0.0
      %473 = vmatpush1.msra.mxu0 0.0
      %474 = vmatprep.subr.mxu0 0.0
      %475 = vmatpush1.msra.mxu0 0.0
      %476 = vmatprep.subr.mxu0 %v444
      %477 = vmatpush1.msra.mxu0 %v442
      %478 = vmatprep.subr.mxu0 0.0
      %479 = vmatpush2.msra.mxu0 0.0
      %480 = vmatprep.subr.mxu0 0.0
      %481 = vmatpush2.msra.mxu0 0.0
      %482 = vmatprep.subr.mxu0 0.0
      %483 = vmatpush2.msra.mxu0 0.0
      %484 = vmatprep.subr.mxu0 0.0
      %485 = vmatpush2.msra.mxu0 0.0
      %486 = vmatprep.subr.mxu0 0.0
      %487 = vmatpush2.msra.mxu0 0.0
      %488 = vmatprep.subr.mxu0 0.0
      %489 = vmatpush2.msra.mxu0 0.0
      %490 = vmatprep.subr.mxu0 0.0
      %491 = vmatpush2.msra.mxu0 0.0
      %492 = vmatprep.subr.mxu0 0.0
      %493 = vmatpush2.msra.mxu0 0.0
      %494 = vmatprep.subr.mxu0 0.0
      %495 = vmatpush2.msra.mxu0 0.0
      %496 = vmatprep.subr.mxu0 0.0
      %497 = vmatpush2.msra.mxu0 0.0
      %498 = vmatprep.subr.mxu0 0.0
      %499 = vmatpush2.msra.mxu0 0.0
      %500 = vmatprep.subr.mxu0 0.0
      %501 = vmatpush2.msra.mxu0 0.0
      %502 = vmatprep.subr.mxu0 0.0
      %503 = vmatpush2.msra.mxu0 0.0
      %504 = vmatprep.subr.mxu0 0.0
      %505 = vmatpush2.msra.mxu0 0.0
      %506 = vmatprep.subr.mxu0 0.0
      %507 = vmatpush2.msra.mxu0 0.0
      %508 = vmatprep.subr.mxu0 0.0
      %509 = vmatpush2.msra.mxu0 0.0
      %510 = vmatprep.mubr.f32.mxu0 0.0
      %511 = vmatmul.mubr.f32.gmra.mxu0 %v440
      %v512 = vpop.f32.mrf.mxu0
      %v513 = vadd.f32 %v433, %v512
      %v514 = vpop.f32.mrf.mxu0
      %v515 = vadd.f32 %v435, %v514
      %516 = vdwg.mxu0
      %v517 = vld [vmem:[%s4] sm:$0xff]
      %519 = vset.pattern.permute.xlu0 0
      %520 = vperm.xlu0 %519, %v517
      %v521 = vpop.permute.xlu0 %520
      %v523 = vadd.f32 %v513, %v521
      %v524 = vadd.f32 %v515, %v521
      %v525 = vmax.f32 %v523, 0.0
      %v526 = vmax.f32 %v524, 0.0
      %v529 = vcombine.low %v525, %v526
      %vm531 = vcmask 130052
      %vm532 = vmor %vm531, %vm361
      %533 = vst.msk [vmem:[%s339] sm:$0xff] %vm532, %v529
      %v534 = vcombine.high %v525, %v526
      %536 = vst.msk [vmem:[%s349] sm:$0xff] %vm532, %v534
      %s537 = smul.u32 2, %s23
      %p538 = scmp.lt.s32.totalorder %s22, 1
      %s539 = scalar_select %p538, %s22, 1
      %p540 = scmp.lt.s32.totalorder %s537, 1
      %s541 = scalar_select %p540, %s537, 1
      %s542 = smul.addr %s539, 2
      %s543 = sadd.s32 %s541, %s542
      %s544 = smul.addr %s543, 4
      %s545 = scalar_lea.vmem %s5, %s544
      %s546 = smul.u32 2, %s23
      %p547 = scmp.lt.s32.totalorder %s22, 1
      %s548 = scalar_select %p547, %s22, 1
      %p549 = scmp.lt.s32.totalorder %s546, 1
      %s550 = scalar_select %p549, %s546, 1
      %s551 = smul.addr %s548, 2
      %s552 = sadd.s32 %s550, %s551
      %s553 = smul.addr %s552, 4
      %s554 = scalar_lea.vmem %s6, %s553
      // Predicated region
      $region41: #{spectral_transform.4} parent=39 // pred_check
        %p555 = pneg %p169
      $region42: #{spectral_transform.4} parent=39 // pred_check_branch
        %557 = sbr.rel (%p555) target = $region44
      $region43: #{spectral_transform.4} parent=39 // pred_region
        %s558 = smul.u32 2, %s23
      $region44: #{spectral_transform.4} parent=39 // pred_fallthru
        _
      // Predicated region
      $region45: #{spectral_transform.4} parent=39 // pred_check
        %p559 = pneg %p197
      $region46: #{spectral_transform.4} parent=39 // pred_check_branch
        %561 = sbr.rel (%p559) target = $region48
      $region47: #{spectral_transform.4} parent=39 // pred_region
        %s562 = smul.u32 2, %s23
      $region48: #{spectral_transform.4} parent=39 // pred_fallthru
        _
    $region40: #{spectral_transform.4} parent=5 // pred_fallthru
      _
    %p563 = scmp.le.s32.totalorder 2, %s13
    // Predicated region
    $region49: #{spectral_transform.4} parent=5 // pred_check
      %p564 = pneg %p563
    $region50: #{spectral_transform.4} parent=5 // pred_check_branch
      %566 = sbr.rel (%p564) target = $region52
    $region51: #{spectral_transform.4} parent=5 // pred_region
      %s567 = ssub.s32 %s13, 2
      // Predicated region
      $region53: #{spectral_transform.4} parent=51 // pred_check
        %p568 = pneg %p175
      $region54: #{spectral_transform.4} parent=51 // pred_check_branch
        %570 = sbr.rel (%p568) target = $region56
      $region55: #{spectral_transform.4} parent=51 // pred_region
        %s571 = smul.u32 2, %s25
        %p572 = scmp.lt.s32.totalorder %s24, 1
        %s573 = scalar_select %p572, %s24, 1
        %p574 = scmp.lt.s32.totalorder %s571, 1
        %s575 = scalar_select %p574, %s571, 1
        %s576 = smul.addr %s573, 2
        %s577 = sadd.s32 %s575, %s576
        %s578 = smul.addr %s577, 4
        %s579 = scalar_lea.vmem %s5, %s578
      $region56: #{spectral_transform.4} parent=51 // pred_fallthru
        _
      // Predicated region
      $region57: #{spectral_transform.4} parent=51 // pred_check
        %p580 = pneg %p203
      $region58: #{spectral_transform.4} parent=51 // pred_check_branch
        %582 = sbr.rel (%p580) target = $region60
      $region59: #{spectral_transform.4} parent=51 // pred_region
        %s583 = smul.u32 2, %s25
        %p584 = scmp.lt.s32.totalorder %s24, 1
        %s585 = scalar_select %p584, %s24, 1
        %p586 = scmp.lt.s32.totalorder %s583, 1
        %s587 = scalar_select %p586, %s583, 1
        %s588 = smul.addr %s585, 2
        %s589 = sadd.s32 %s587, %s588
        %s590 = smul.addr %s589, 4
        %s591 = scalar_lea.vmem %s6, %s590
      $region60: #{spectral_transform.4} parent=51 // pred_fallthru
        _
    $region52: #{spectral_transform.4} parent=5 // pred_fallthru
      _
  $region6: #{spectral_transform.4} parent=0 // loop_footer
    %s17 = sadd.s32 1, %s13
  $region7: #{spectral_transform.4} parent=0 // loop_footer_branch
    %12 = sbr.rel target = $region3
  $region8: #{spectral_transform.4} parent=0 // loop_exit
    _

// kernel: spectral_transform.5
$region0: #{spectral_transform.5}
  #allocation0 [shape = 'u32[]', space=smem, size = 0x4, offset = 0x4, fixed_abs, tag = 'smem constant byte address 0x4 - core index']
  #allocation1 [shape = 'u32[144,128]{1,0:T(1,128)}', space=vmem, size = 0x12000, scoped, tag = 'internal scratch']
  %s0 = inlined_call_operand.vmem [shape: f32[2,4,256], index: 0, kind: input, shape index: {}]
  %s1 = inlined_call_operand.vmem [shape: f32[2,4,256], index: 1, kind: input, shape index: {}]
  %s2 = inlined_call_operand.vmem [shape: f32[8,4], index: 2, kind: input, shape index: {}]
  %s3 = inlined_call_operand.vmem [shape: f32[2,8,256], index: 3, kind: output, shape index: {}]
  %s4 = sld [smem:[#allocation0]]
  $region45: #{spectral_transform.5} parent=0
    _
  %s6 = ssub.s32 1, %s4
  %s7 = scalar_select 0, %s6, %s4
  loop: start=0, step=1, limit=4
  $region2: #{spectral_transform.5} parent=0 // loop_pre_header
    _
  $region3: #{spectral_transform.5} parent=0 // loop_header
    %s9 = sphi 0, %s13
    %p10 = scmp.ge.s32.totalorder %s9, 4
    %s16 = sphi 0, %s28
    %s17 = sphi 0, %s24
    %s18 = sphi 0, %s16
    %s19 = sphi 0, %s17
    %s20 = sphi 0, %s18
    %s21 = sphi 0, %s19
    %s33 = sphi 0, %s35
    %s36 = sphi 0, %s33
    %s37 = sphi 0, %s36
    %s53 = sphi 0, %s37
    %s61 = sphi 0, %s63
    %s64 = sphi 0, %s61
    %s65 = sphi 0, %s64
    %s81 = sphi 0, %s65
    %s85 = sphi 0, %s85
    %s87 = sphi 0, %s85
    %s88 = sphi 0, %s87
    %s102 = sphi 0, %s88
    %s110 = sphi 0, %s112
    %s113 = sphi 0, %s110
    %s114 = sphi 0, %s113
    %s130 = sphi 0, %s114
  $region4: #{spectral_transform.5} parent=0 // loop_header_branch
    %12 = sbr.rel (%p10) target = $region8
  $region5: #{spectral_transform.5} parent=0 // loop_body
    %s14 = ssub.s32 %s9, 1
    %s15 = ssub.s32 %s9, 2
    %s22 = sadd.s32 1, %s17
    %p23 = scmp.ge.s32.totalorder %s22, 1
    %s24 = scalar_select %p23, 0, %s22
    %s25 = sadd.s32 1, %s16
    %s26 = scalar_select %p23, %s25, %s16
    %p27 = scmp.ge.s32.totalorder %s26, 2
    %s28 = scalar_select %p27, 0, %s26
    %s29 = ssub.s32 %s16, %s28
    %s30 = ssub.s32 %s17, %s24
    %s31 = sor.u32 %s29, %s30
    %p32 = scmp.eq.s32.totalorder %s31, 0
    %s34 = sadd.s32 %s33, 1
    %s35 = scalar_select %p32, %s33, %s34
    %p38 = pneg %p32
    %p39 = scmp.eq.s32.totalorder %s9, 1
    %p40 = por %p38, %p39
    %p41 = scmp.ne.s32.totalorder %s33, %s36
    %p42 = scmp.eq.s32.totalorder %s9, 0
    %p43 = por %p41, %p42
    %p44 = scmp.ne.s32.totalorder %s33, %s36
    %p45 = scmp.eq.s32.totalorder %s14, 1
    %p46 = por %p44, %p45
    %p47 = scmp.ne.s32.totalorder %s36, %s37
    %p48 = scmp.eq.s32.totalorder %s14, 0
    %p49 = por %p47, %p48
    %p50 = scmp.ne.s32.totalorder %s36, %s37
    %p51 = scmp.eq.s32.totalorder %s15, 1
    %p52 = por %p50, %p51
    %p54 = scmp.ne.s32.totalorder %s37, %s53
    %p55 = scmp.eq.s32.totalorder %s15, 0
    %p56 = por %p54, %p55
    %s57 = ssub.s32 %s16, %s28
    %s58 = ssub.s32 %s17, %s24
    %s59 = sor.u32 %s57, %s58
    %p60 = scmp.eq.s32.totalorder %s59, 0
    %s62 = sadd.s32 %s61, 1
    %s63 = scalar_select %p60, %s61, %s62
    %p66 = pneg %p60
    %p67 = scmp.eq.s32.totalorder %s9, 1
    %p68 = por %p66, %p67
    %p69 = scmp.ne.s32.totalorder %s61, %s64
    %p70 = scmp.eq.s32.totalorder %s9, 0
    %p71 = por %p69, %p70
    %p72 = scmp.ne.s32.totalorder %s61, %s64
    %p73 = scmp.eq.s32.totalorder %s14, 1
    %p74 = por %p72, %p73
    %p75 = scmp.ne.s32.totalorder %s64, %s65
    %p76 = scmp.eq.s32.totalorder %s14, 0
    %p77 = por %p75, %p76
    %p78 = scmp.ne.s32.totalorder %s64, %s65
    %p79 = scmp.eq.s32.totalorder %s15, 1
    %p80 = por %p78, %p79
    %p82 = scmp.ne.s32.totalorder %s65, %s81
    %p83 = scmp.eq.s32.totalorder %s15, 0
    %p84 = por %p82, %p83
    %s86 = sadd.s32 %s85, 1
    %p89 = scmp.eq.s32.totalorder %s9, 1
    %p90 = scmp.ne.s32.totalorder %s85, %s87
    %p91 = scmp.eq.s32.totalorder %s9, 0
    %p92 = por %p90, %p91
    %p93 = scmp.ne.s32.totalorder %s85, %s87
    %p94 = scmp.eq.s32.totalorder %s14, 1
    %p95 = por %p93, %p94
    %p96 = scmp.ne.s32.totalorder %s87, %s88
    %p97 = scmp.eq.s32.totalorder %s14, 0
    %p98 = por %p96, %p97
    %p99 = scmp.ne.s32.totalorder %s87, %s88
    %p100 = scmp.eq.s32.totalorder %s15, 1
    %p101 = por %p99, %p100
    %p103 = scmp.ne.s32.totalorder %s88, %s102
    %p104 = scmp.eq.s32.totalorder %s15, 0
    %p105 = por %p103, %p104
    %s106 = ssub.s32 %s16, %s28
    %s107 = ssub.s32 %s17, %s24
    %s108 = sor.u32 %s106, %s107
    %p109 = scmp.eq.s32.totalorder %s108, 0
    %s111 = sadd.s32 %s110, 1
    %s112 = scalar_select %p109, %s110, %s111
    %p115 = pneg %p109
    %p116 = scmp.eq.s32.totalorder %s9, 1
    %p117 = por %p115, %p116
    %p118 = scmp.ne.s32.totalorder %s110, %s113
    %p119 = scmp.eq.s32.totalorder %s9, 0
    %p120 = por %p118, %p119
    %p121 = scmp.ne.s32.totalorder %s110, %s113
    %p122 = scmp.eq.s32.totalorder %s14, 1
    %p123 = por %p121, %p122
    %p124 = scmp.ne.s32.totalorder %s113, %s114
    %p125 = scmp.eq.s32.totalorder %s14, 0
    %p126 = por %p124, %p125
    %p127 = scmp.ne.s32.totalorder %s113, %s114
    %p128 = scmp.eq.s32.totalorder %s15, 1
    %p129 = por %p127, %p128
    %p131 = scmp.ne.s32.totalorder %s114, %s130
    %p132 = scmp.eq.s32.totalorder %s15, 0
    %p133 = por %p131, %p132
    %p134 = scmp.le.s32.totalorder 1, %s9
    %p135 = scmp.lt.s32.totalorder %s9, 3
    %p136 = pnand %p134, %p135
    %p137 = pneg %p136
    // Predicated region
    $region9: #{spectral_transform.5} parent=5 // pred_check
      _
    $region10: #{spectral_transform.5} parent=5 // pred_check_branch
      %139 = sbr.rel (%p136) target = $region12
    $region11: #{spectral_transform.5} parent=5 // pred_region
      %s140 = ssub.s32 %s9, 1
      // Predicated region
      $region13: #{spectral_transform.5} parent=11 // pred_check
        %p141 = pneg %p98
      $region14: #{spectral_transform.5} parent=11 // pred_check_branch
        %143 = sbr.rel (%p141) target = $region16
      $region15: #{spectral_transform.5} parent=11 // pred_region
        _
      $region16: #{spectral_transform.5} parent=11 // pred_fallthru
        _
    $region12: #{spectral_transform.5} parent=5 // pred_fallthru
      _
    %p144 = scmp.lt.s32.totalorder %s9, 2
    // Predicated region
    $region17: #{spectral_transform.5} parent=5 // pred_check
      %p145 = pneg %p144
    $region18: #{spectral_transform.5} parent=5 // pred_check_branch
      %147 = sbr.rel (%p145) target = $region20
    $region19: #{spectral_transform.5} parent=5 // pred_region
      // Predicated region
      $region21: #{spectral_transform.5} parent=19 // pred_check
        %p148 = pneg %p43
      $region22: #{spectral_transform.5} parent=19 // pred_check_branch
        %150 = sbr.rel (%p148) target = $region24
      $region23: #{spectral_transform.5} parent=19 // pred_region
        %s151 = smul.u32 2, %s17
        %p152 = scmp.lt.s32.totalorder %s16, 1
        %s153 = scalar_select %p152, %s16, 1
        %p154 = scmp.lt.s32.totalorder %s151, 1
        %s155 = scalar_select %p154, %s151, 1
        %s156 = smul.addr %s153, 2
        %s157 = sadd.s32 %s155, %s156
        %s158 = smul.addr %s157, 4
        %s159 = scalar_lea.vmem %s0, %s158
        %s160 = smul.u32 2, %s17
      $region24: #{spectral_transform.5} parent=19 // pred_fallthru
        _
      // Predicated region
      $region25: #{spectral_transform.5} parent=19 // pred_check
        %p161 = pneg %p71
      $region26: #{spectral_transform.5} parent=19 // pred_check_branch
        %163 = sbr.rel (%p161) target = $region28
      $region27: #{spectral_transform.5} parent=19 // pred_region
        %s164 = smul.u32 2, %s17
        %p165 = scmp.lt.s32.totalorder %s16, 1
        %s166 = scalar_select %p165, %s16, 1
        %p167 = scmp.lt.s32.totalorder %s164, 1
        %s168 = scalar_select %p167, %s164, 1
        %s169 = smul.addr %s166, 2
        %s170 = sadd.s32 %s168, %s169
        %s171 = smul.addr %s170, 4
        %s172 = scalar_lea.vmem %s1, %s171
        %s173 = smul.u32 2, %s17
      $region28: #{spectral_transform.5} parent=19 // pred_fallthru
        _
    $region20: #{spectral_transform.5} parent=5 // pred_fallthru
      _
    %p174 = scmp.le.s32.totalorder 1, %s9
    %p175 = scmp.lt.s32.totalorder %s9, 3
    %p176 = pnand %p174, %p175
    %p177 = pneg %p176
    // Predicated region
    $region29: #{spectral_transform.5} parent=5 // pred_check
      _
    $region30: #{spectral_transform.5} parent=5 // pred_check_branch
      %179 = sbr.rel (%p176) target = $region32
    $region31: #{spectral_transform.5} parent=5 // pred_region
      %s180 = ssub.s32 %s9, 1
      %s181 = smul.u32 2, %s19
      %p182 = scmp.lt.s32.totalorder %s18, 1
      %s183 = scalar_select %p182, %s18, 1
      %p184 = scmp.lt.s32.totalorder %s181, 1
      %s185 = scalar_select %p184, %s181, 1
      %s186 = smul.addr %s183, 2
      %s187 = sadd.s32 %s185, %s186
      %s188 = smul.addr %s187, 4
      %s189 = scalar_lea.vmem %s0, %s188
      %p190 = pneg %p49
      %p191 = pneg %p46
      %s192 = smul.u32 2, %s19
      %p193 = scmp.lt.s32.totalorder %s18, 1
      %s194 = scalar_select %p193, %s18, 1
      %p195 = scmp.lt.s32.totalorder %s192, 1
      %s196 = scalar_select %p195, %s192, 1
      %s197 = smul.addr %s194, 2
      %s198 = sadd.s32 %s196, %s197
      %s199 = smul.addr %s198, 4
      %s200 = scalar_lea.vmem %s1, %s199
      %p201 = pneg %p77
      %p202 = pneg %p74
      %p203 = pneg %p98
      %p204 = pneg %p95
      %p205 = pneg %p126
      %p206 = pneg %p123
      %s207 = smul.u32 2, %s19
      %p208 = scmp.lt.s32.totalorder %s18, 1
      %s209 = scalar_select %p208, %s18, 1
      %p210 = scmp.lt.s32.totalorder %s207, 1
      %s211 = scalar_select %p210, %s207, 1
      %s212 = smul.addr %s209, 2
      %s213 = sadd.s32 %s211, %s212
      %s214 = smul.addr %s213, 8
      %s215 = scalar_lea.vmem %s3, %s214
      %s216 = smul.u32 2, %s19
      %p217 = scmp.lt.s32.totalorder %s18, 1
      %s218 = scalar_select %p217, %s18, 1
      %p219 = scmp.lt.s32.totalorder %s216, 1
      %s220 = scalar_select %p219, %s216, 1
      %s221 = smul.addr %s218, 2
      %s222 = sadd.s32 %s220, %s221
      %s223 = smul.addr %s222, 4
      %s224 = scalar_lea.vmem %s0, %s223
      %s225 = smul.u32 2, %s19
      %s226 = smul.u32 2, %s19
      %p227 = scmp.lt.s32.totalorder %s18, 1
      %s228 = scalar_select %p227, %s18, 1
      %p229 = scmp.lt.s32.totalorder %s226, 1
      %s230 = scalar_select %p229, %s226, 1
      %s231 = smul.addr %s228, 2
      %s232 = sadd.s32 %s230, %s231
      %s233 = smul.addr %s232, 4
      %s234 = scalar_lea.vmem %s1, %s233
      %s235 = smul.u32 2, %s19
      %s236 = smul.u32 2, %s19
      %p237 = scmp.lt.s32.totalorder %s18, 1
      %s238 = scalar_select %p237, %s18, 1
      %p239 = scmp.lt.s32.totalorder %s236, 1
      %s240 = scalar_select %p239, %s236, 1
      %s241 = smul.addr %s238, 2
      %s242 = sadd.s32 %s240, %s241
      %s243 = smul.addr %s242, 8
      %s244 = scalar_lea.vmem %s3, %s243
      %s245 = smul.u32 2, %s19
      %v246 = vld [vmem:[%s224] sm:$0xff]
      %v247 = vld [vmem:[%s234] sm:$0xff]
      %v248 = vadd.f32 %v246, %v247
      %v249 = vld [vmem:[%s2] sm:$0xff]
      %v251 = vcombine.high %v248, %v248
      %vm252 = vcmask 31744
      %v254 = vsel %vm252, %v249, 0
      %vm256 = vcmask 1043456
      %v257 = vsel %vm256, %v248, 0
      %v259 = vsel %vm256, %v251, 0
      %261 = vmatprep.subr.mxu0 0.0
      %262 = vmatpush1.msra.mxu0 0.0
      %263 = vmatprep.subr.mxu0 0.0
      %264 = vmatpush1.msra.mxu0 0.0
      %265 = vmatprep.subr.mxu0 0.0
      %266 = vmatpush1.msra.mxu0 0.0
      %267 = vmatprep.subr.mxu0 0.0
      %268 = vmatpush1.msra.mxu0 0.0
      %269 = vmatprep.subr.mxu0 0.0
      %270 = vmatpush1.msra.mxu0 0.0
      %271 = vmatprep.subr.mxu0 0.0
      %272 = vmatpush1.msra.mxu0 0.0
      %273 = vmatprep.subr.mxu0 0.0
      %274 = vmatpush1.msra.mxu0 0.0
      %275 = vmatprep.subr.mxu0 0.0
      %276 = vmatpush1.msra.mxu0 0.0
      %277 = vmatprep.subr.mxu0 0.0
      %278 = vmatpush1.msra.mxu0 0.0
      %279 = vmatprep.subr.mxu0 0.0
      %280 = vmatpush1.msra.mxu0 0.0
      %281 = vmatprep.subr.mxu0 0.0
      %282 = vmatpush1.msra.mxu0 0.0
      %283 = vmatprep.subr.mxu0 0.0
      %284 = vmatpush1.msra.mxu0 0.0
      %285 = vmatprep.subr.mxu0 0.0
      %286 = vmatpush1.msra.mxu0 0.0
      %287 = vmatprep.subr.mxu0 0.0
      %288 = vmatpush1.msra.mxu0 0.0
      %289 = vmatprep.subr.mxu0 0.0
      %290 = vmatpush1.msra.mxu0 0.0
      %291 = vmatprep.subr.mxu0 %v259
      %292 = vmatpush1.msra.mxu0 %v257
      %293 = vmatprep.subr.mxu0 0.0
      %294 = vmatpush2.msra.mxu0 0.0
      %295 = vmatprep.subr.mxu0 0.0
      %296 = vmatpush2.msra.mxu0 0.0
      %297 = vmatprep.subr.mxu0 0.0
      %298 = vmatpush2.msra.mxu0 0.0
      %299 = vmatprep.subr.mxu0 0.0
      %300 = vmatpush2.msra.mxu0 0.0
      %301 = vmatprep.subr.mxu0 0.0
      %302 = vmatpush2.msra.mxu0 0.0
      %303 = vmatprep.subr.mxu0 0.0
      %304 = vmatpush2.msra.mxu0 0.0
      %305 = vmatprep.subr.mxu0 0.0
      %306 = vmatpush2.msra.mxu0 0.0
      %307 = vmatprep.subr.mxu0 0.0
      %308 = vmatpush2.msra.mxu0 0.0
      %309 = vmatprep.subr.mxu0 0.0
      %310 = vmatpush2.msra.mxu0 0.0
      %311 = vmatprep.subr.mxu0 0.0
      %312 = vmatpush2.msra.mxu0 0.0
      %313 = vmatprep.subr.mxu0 0.0
      %314 = vmatpush2.msra.mxu0 0.0
      %315 = vmatprep.subr.mxu0 0.0
      %316 = vmatpush2.msra.mxu0 0.0
      %317 = vmatprep.subr.mxu0 0.0
      %318 = vmatpush2.msra.mxu0 0.0
      %319 = vmatprep.subr.mxu0 0.0
      %320 = vmatpush2.msra.mxu0 0.0
      %321 = vmatprep.subr.mxu0 0.0
      %322 = vmatpush2.msra.mxu0 0.0
      %323 = vmatprep.subr.mxu0 0.0
      %324 = vmatpush2.msra.mxu0 0.0
      %325 = vmatprep.mubr.f32.mxu0 0.0
      %326 = vmatmul.mubr.f32.gmra.mxu0 %v254
      %v327 = vpop.f32.mrf.mxu0
      %v328 = vadd.f32 0.0, %v327
      %v329 = vpop.f32.mrf.mxu0
      %v330 = vadd.f32 0.0, %v329
      %331 = vdwg.mxu0
      %332 = vst [vmem:[%s244] sm:$0xff] %v328
      %333 = vst [vmem:[%s244 + $0x8] sm:$0xff] %v330
      %s334 = smul.u32 2, %s19
      %p335 = scmp.lt.s32.totalorder %s18, 1
      %s336 = scalar_select %p335, %s18, 1
      %p337 = scmp.lt.s32.totalorder %s334, 1
      %s338 = scalar_select %p337, %s334, 1
      %s339 = smul.addr %s336, 2
      %s340 = sadd.s32 %s338, %s339
      %s341 = smul.addr %s340, 8
      %s342 = scalar_lea.vmem %s3, %s341
      // Predicated region
      $region33: #{spectral_transform.5} parent=31 // pred_check
        %p343 = pneg %p123
      $region34: #{spectral_transform.5} parent=31 // pred_check_branch
        %345 = sbr.rel (%p343) target = $region36
      $region35: #{spectral_transform.5} parent=31 // pred_region
        %s346 = smul.u32 2, %s19
      $region36: #{spectral_transform.5} parent=31 // pred_fallthru
        _
    $region32: #{spectral_transform.5} parent=5 // pred_fallthru
      _
    %p347 = scmp.le.s32.totalorder 2, %s9
    // Predicated region
    $region37: #{spectral_transform.5} parent=5 // pred_check
      %p348 = pneg %p347
    $region38: #{spectral_transform.5} parent=5 // pred_check_branch
      %350 = sbr.rel (%p348) target = $region40
    $region39: #{spectral_transform.5} parent=5 // pred_region
      %s351 = ssub.s32 %s9, 2
      // Predicated region
      $region41: #{spectral_transform.5} parent=39 // pred_check
        %p352 = pneg %p129
      $region42: #{spectral_transform.5} parent=39 // pred_check_branch
        %354 = sbr.rel (%p352) target = $region44
      $region43: #{spectral_transform.5} parent=39 // pred_region
        %s355 = smul.u32 2, %s21
        %p356 = scmp.lt.s32.totalorder %s20, 1
        %s357 = scalar_select %p356, %s20, 1
        %p358 = scmp.lt.s32.totalorder %s355, 1
        %s359 = scalar_select %p358, %s355, 1
        %s360 = smul.addr %s357, 2
        %s361 = sadd.s32 %s359, %s360
        %s362 = smul.addr %s361, 8
        %s363 = scalar_lea.vmem %s3, %s362
      $region44: #{spectral_transform.5} parent=39 // pred_fallthru
        _
    $region40: #{spectral_transform.5} parent=5 // pred_fallthru
      _
  $region6: #{spectral_transform.5} parent=0 // loop_footer
    %s13 = sadd.s32 1, %s9
  $region7: #{spectral_transform.5} parent=0 // loop_footer_branch
    %8 = sbr.rel target = $region3
  $region8: #{spectral_transform.5} parent=0 // loop_exit
    _

</llo_original>
